<compile_context>
chip_gen: v6e
topology: v6e:2x2x1
jax: 0.10.0
libtpu: 0.0.40
codegen_flags: <defaults>
</compile_context>

<pallas_src>
import jax
import jax.numpy as jnp
import numpy as np
from jax.experimental import pallas as pl
from jax.experimental.pallas import tpu as pltpu

BBLK = 8  # batch block = one f32 sublane tile


def decoder_kernel(tok_ref,                       # SMEM (S, Bp) int32, scalar-prefetched
                   hprev_ref,                     # VMEM (L, BBLK, H)  initial hidden
                   enc_ref,                       # VMEM (BBLK, T, H)  encoder outputs
                   embtab_ref,                    # VMEM (V, E)        embedding table
                   gru_ref, attn_ref, out_ref,    # packed weight slabs (resident)
                   logp_ref,                      # out  (1, BBLK, Vp) per-step log-probs
                   hnew_ref,                      # out  (L, BBLK, H)  final hidden
                   hcar_ref,                      # scratch (L, BBLK, H) hidden-state carry
                   proje_ref):                    # scratch (BBLK, T, H) cached enc @ W_e + b
    b = pl.program_id(0)
    s = pl.program_id(1)

    L, _BBLK, H = hprev_ref.shape
    _, T, _ = enc_ref.shape
    _V, E = embtab_ref.shape

    # ---- per-batch-block init: load the carry, precompute the encoder projection ----
    @pl.when(s == 0)
    def _init():
        hcar_ref[...] = hprev_ref[...]
        awe = attn_ref[H:2 * H, :]                 # (H, H) encoder half of Linear(2H, H)
        ab = attn_ref[2 * H:2 * H + 1, :]          # (1, H) bias
        pe = jnp.dot(enc_ref[...].reshape(_BBLK * T, H), awe,
                     preferred_element_type=jnp.float32) + ab
        proje_ref[...] = pe.reshape(_BBLK, T, H)

    # ---- in-kernel embedding gather (token ids read from scalar-prefetch SMEM) ----
    rows = []
    for j in range(_BBLK):
        tok = tok_ref[s, b * _BBLK + j]
        rows.append(embtab_ref[pl.ds(tok, 1), :])
    emb = jnp.concatenate(rows, axis=0)            # (BBLK, E)
    # TODO(synk): dropout on the embedding skipped (eval-mode identity).

    # ---- Bahdanau ("concat") attention over encoder time steps ----
    awh = attn_ref[0:H, :]                         # (H, H) hidden half of Linear(2H, H)
    v = attn_ref[2 * H + 1:2 * H + 2, :]           # (1, H)
    h_top = hcar_ref[L - 1]                        # (BBLK, H) hidden BEFORE this step
    proj_h = jnp.dot(h_top, awh, preferred_element_type=jnp.float32)
    energy = jnp.tanh(proj_h[:, None, :] + proje_ref[...])          # (BBLK, T, H)
    scores = jnp.sum(energy * v[None, :, :], axis=-1)               # (BBLK, T)
    m = jnp.max(scores, axis=-1, keepdims=True)
    e = jnp.exp(scores - m)
    attn_w = e / jnp.sum(e, axis=-1, keepdims=True)                 # (BBLK, T)
    # context = attn_weights.bmm(encoder_outputs) on the MXU (batched matvec, q=1)
    context = jnp.einsum('bqt,bth->bqh', attn_w[:, None, :], enc_ref[...],
                         preferred_element_type=jnp.float32)[:, 0, :]   # (BBLK, H)

    # ---- multi-layer GRU, one time step (gates fused, order r | z | n on 3H lanes) ----
    x = jnp.concatenate([emb, context], axis=1)    # (BBLK, E + H), fits one vreg's lanes
    w_row = 0
    b_row = E + 2 * L * H                          # first bias row in the gru slab
    for l in range(L):
        din = (E + H) if l == 0 else H
        wi = gru_ref[w_row:w_row + din, :]
        w_row += din
        wh = gru_ref[w_row:w_row + H, :]
        w_row += H
        bi = gru_ref[b_row + 2 * l:b_row + 2 * l + 1, :]
        bh = gru_ref[b_row + 2 * l + 1:b_row + 2 * l + 2, :]
        h_prev = hcar_ref[l]
        xi = jnp.dot(x, wi, preferred_element_type=jnp.float32) + bi    # (BBLK, 3H)
        hh = jnp.dot(h_prev, wh, preferred_element_type=jnp.float32) + bh
        rz = jax.nn.sigmoid(xi[:, :2 * H] + hh[:, :2 * H])
        r = rz[:, :H]
        z = rz[:, H:]
        n = jnp.tanh(xi[:, 2 * H:] + r * hh[:, 2 * H:])
        h_new = (1.0 - z) * n + z * h_prev
        hcar_ref[l] = h_new
        x = h_new                                  # inter-layer dropout: eval identity
    hnew_ref[...] = hcar_ref[...]                  # resident out block; final writeback has last step

    # ---- output projection + log_softmax over the lane-padded vocab ----
    ow = out_ref[0:H, :]                           # (H, Vp), pad columns are 0
    ob = out_ref[H:H + 1, :]                       # (1, Vp), pad columns are -1e30
    logits = jnp.dot(x, ow, preferred_element_type=jnp.float32) + ob     # (BBLK, Vp)
    lm = jnp.max(logits, axis=-1, keepdims=True)
    sh = logits - lm
    logp_ref[0] = sh - jnp.log(jnp.sum(jnp.exp(sh), axis=-1, keepdims=True))


def pack_params(p, L=2):
    """Pack per-tensor params into lane-friendly VMEM slabs (done once, not per step)."""
    H = p["attn_wh"].shape[0]
    E = p["embedding"].shape[1]
    V = p["out_w"].shape[1]
    Vp = ((V + 127) // 128) * 128

    def cat_gates(a, b, c):                        # gate order r | z | n along lanes
        return jnp.concatenate([a, b, c], axis=1)

    w_rows, b_rows = [], []
    for l in range(L):
        w_rows.append(cat_gates(p[f"wir{l}"], p[f"wiz{l}"], p[f"win{l}"]))   # (din_l, 3H)
        w_rows.append(cat_gates(p[f"whr{l}"], p[f"whz{l}"], p[f"whn{l}"]))   # (H, 3H)
        b_rows.append(cat_gates(p[f"bir{l}"], p[f"biz{l}"], p[f"bin{l}"]))   # (1, 3H)
        b_rows.append(cat_gates(p[f"bhr{l}"], p[f"bhz{l}"], p[f"bhn{l}"]))
    gru_pack = jnp.concatenate(w_rows + b_rows, axis=0)

    attn_pack = jnp.concatenate([p["attn_wh"], p["attn_we"], p["attn_b"], p["v"]], axis=0)

    out_w_p = jnp.zeros((H, Vp), jnp.float32).at[:, :V].set(p["out_w"])
    out_b_p = jnp.full((1, Vp), -1e30, jnp.float32).at[:, :V].set(p["out_b"])
    out_pack = jnp.concatenate([out_w_p, out_b_p], axis=0)

    return dict(embedding=p["embedding"], gru=gru_pack, attn=attn_pack,
                out=out_pack, vocab_size=V)


def bahdanau_decode_fused(tokens, last_hidden, encoder_outputs, packed):
    """Run S decode steps in one gridded pallas_call.

    tokens:          (S, B) int32 token ids fed at each step
    last_hidden:     (L, B, H) f32 initial decoder hidden state
    encoder_outputs: (T, B, H) f32
    returns (log_probs (S, B, V), final_hidden (L, B, H))
    """
    S, B = tokens.shape
    L, _, H = last_hidden.shape
    T = encoder_outputs.shape[0]
    E = packed["embedding"].shape[1]
    V = packed["vocab_size"]
    Vp = packed["out"].shape[1]

    # pad batch to a full sublane tile
    Bp = ((B + BBLK - 1) // BBLK) * BBLK
    nb = Bp // BBLK
    if Bp != B:
        tokens = jnp.pad(tokens, ((0, 0), (0, Bp - B)))
        last_hidden = jnp.pad(last_hidden, ((0, 0), (0, Bp - B), (0, 0)))
        encoder_outputs = jnp.pad(encoder_outputs, ((0, 0), (0, Bp - B), (0, 0)))

    enc_bth = jnp.transpose(encoder_outputs, (1, 0, 2))    # (B,T,H), once per fused call

    embtab = packed["embedding"]
    gru, attn, out = packed["gru"], packed["attn"], packed["out"]

    flops = int(nb * (S * (2 * BBLK * H * H                      # proj_h
                           + 4 * BBLK * T * H                    # scores + context
                           + 2 * BBLK * 3 * H * (E + 2 * L * H)  # fused GRU matmuls
                           + 2 * BBLK * H * Vp)                  # output projection
                      + 2 * BBLK * T * H * H))                   # enc projection (once/block)
    transcend = int(nb * S * (BBLK * T * H + BBLK * T + BBLK * Vp + 4 * L * BBLK * H))
    bytes_acc = int(sum(int(np.prod(a.shape)) * a.dtype.itemsize
                        for a in (tokens, last_hidden, enc_bth, embtab, gru, attn, out))
                    + S * Bp * Vp * 4 + L * Bp * H * 4)

    grid_spec = pltpu.PrefetchScalarGridSpec(
        num_scalar_prefetch=1,                  # tokens -> SMEM, available to index_maps/kernel
        grid=(nb, S),
        in_specs=[
            pl.BlockSpec((L, BBLK, H), lambda b, s, tok: (0, b, 0)),     # initial hidden
            pl.BlockSpec((BBLK, T, H), lambda b, s, tok: (b, 0, 0)),     # encoder outputs
            pl.BlockSpec((V, E), lambda b, s, tok: (0, 0)),              # embedding table (resident)
            pl.BlockSpec(gru.shape, lambda b, s, tok: (0, 0)),           # gru slab (resident)
            pl.BlockSpec(attn.shape, lambda b, s, tok: (0, 0)),          # attn slab (resident)
            pl.BlockSpec(out.shape, lambda b, s, tok: (0, 0)),           # out slab (resident)
        ],
        out_specs=[
            pl.BlockSpec((1, BBLK, Vp), lambda b, s, tok: (s, b, 0)),    # per-step log-probs
            pl.BlockSpec((L, BBLK, H), lambda b, s, tok: (0, b, 0)),     # final hidden
        ],
        scratch_shapes=[pltpu.VMEM((L, BBLK, H), jnp.float32),           # hidden carry
                        pltpu.VMEM((BBLK, T, H), jnp.float32)],          # cached enc projection
    )

    logp_pad, hnew = pl.pallas_call(
        decoder_kernel,
        out_shape=(jax.ShapeDtypeStruct((S, Bp, Vp), jnp.float32),
                   jax.ShapeDtypeStruct((L, Bp, H), jnp.float32)),
        grid_spec=grid_spec,
        compiler_params=pltpu.CompilerParams(
            dimension_semantics=("parallel", "arbitrary"),
            vmem_limit_bytes=32 * 1024 * 1024),
        cost_estimate=pl.CostEstimate(flops=flops, transcendentals=transcend,
                                      bytes_accessed=bytes_acc),
    )(tokens.astype(jnp.int32), last_hidden, enc_bth, embtab, gru, attn, out)

    return logp_pad[:, :B, :V], hnew[:, :B, :]


def bahdanau_decoder_step(word_input, last_hidden, encoder_outputs, packed):
    """Single decode step, same signature/semantics as the PyTorch forward."""
    logp, hnew = bahdanau_decode_fused(word_input[None, :], last_hidden,
                                       encoder_outputs, packed)
    return logp[0], hnew


# ----------------------------- pure-JAX reference -----------------------------

def init_params(key, H, E, V, L=2):
    ks = list(jax.random.split(key, 64))
    it = iter(ks)

    def u(shape, scale):
        return jax.random.uniform(next(it), shape, jnp.float32, -scale, scale)

    k = 1.0 / np.sqrt(H)
    params = dict(
        embedding=jax.random.normal(next(it), (V, E), jnp.float32) * 0.1,
        attn_wh=u((H, H), k),          # first half of Linear(2H, H) weight (x @ W form)
        attn_we=u((H, H), k),          # second half
        attn_b=u((1, H), k),
        v=jax.random.normal(next(it), (1, H), jnp.float32) * k,
        out_w=u((H, V), k),
        out_b=u((1, V), k),
    )
    for l in range(L):
        din = (E + H) if l == 0 else H
        for name in ("wir", "wiz", "win"):
            params[f"{name}{l}"] = u((din, H), k)
        for name in ("whr", "whz", "whn"):
            params[f"{name}{l}"] = u((H, H), k)
        for name in ("bir", "biz", "bin", "bhr", "bhz", "bhn"):
            params[f"{name}{l}"] = u((1, H), k)
    return params


def reference_step(word_input, last_hidden, encoder_outputs, p):
    """Mirrors BahdanauAttnDecoderRNN.forward (eval mode) for one step."""
    emb = p["embedding"][word_input]
    enc = jnp.transpose(encoder_outputs, (1, 0, 2))   # (B, T, H)
    h_top = last_hidden[-1]

    proj_h = h_top @ p["attn_wh"]
    proj_e = jnp.einsum("bth,hk->btk", enc, p["attn_we"])
    energy = jnp.tanh(proj_h[:, None, :] + proj_e + p["attn_b"][None])
    scores = jnp.sum(energy * p["v"][None], axis=-1)
    attn_w = jax.nn.softmax(scores, axis=-1)
    context = jnp.sum(attn_w[:, :, None] * enc, axis=1)

    def gru(x, h, l):
        r = jax.nn.sigmoid(x @ p[f"wir{l}"] + p[f"bir{l}"] + h @ p[f"whr{l}"] + p[f"bhr{l}"])
        z = jax.nn.sigmoid(x @ p[f"wiz{l}"] + p[f"biz{l}"] + h @ p[f"whz{l}"] + p[f"bhz{l}"])
        n = jnp.tanh(x @ p[f"win{l}"] + p[f"bin{l}"] + r * (h @ p[f"whn{l}"] + p[f"bhn{l}"]))
        return (1.0 - z) * n + z * h

    L = last_hidden.shape[0]
    x = jnp.concatenate([emb, context], axis=-1)
    new_h = []
    for l in range(L):
        x = gru(x, last_hidden[l], l)
        new_h.append(x)
    logits = x @ p["out_w"] + p["out_b"]
    return jax.nn.log_softmax(logits, axis=-1), jnp.stack(new_h, axis=0)


def reference_decode(tokens, last_hidden, encoder_outputs, p):
    h = last_hidden
    logps = []
    for s in range(tokens.shape[0]):
        logp, h = reference_step(tokens[s], h, encoder_outputs, p)
        logps.append(logp)
    return jnp.stack(logps, axis=0), h


if __name__ == "__main__":
    B, T, H, E, V, L, S = 8, 8, 32, 32, 40, 2, 4
    key = jax.random.PRNGKey(0)
    kp, k1, k2, k3 = jax.random.split(key, 4)

    params = init_params(kp, H, E, V, L)
    packed = pack_params(params, L)

    tokens = jax.random.randint(k1, (S, B), 0, V)                     # (S, B)
    last_hidden = jax.random.normal(k2, (L, B, H), jnp.float32)       # (L, B, H)
    encoder_outputs = jax.random.normal(k3, (T, B, H), jnp.float32)   # (T, B, H)

    # fused multi-step decode (one pallas_call for all S steps)
    logp, hnew = bahdanau_decode_fused(tokens, last_hidden, encoder_outputs, packed)
    logp, hnew = jax.block_until_ready((logp, hnew))

    ref_logp, ref_h = reference_decode(tokens, last_hidden, encoder_outputs, params)
    assert logp.shape == (S, B, V) and hnew.shape == (L, B, H)
    assert np.allclose(np.asarray(logp), np.asarray(ref_logp), atol=2e-4, rtol=2e-4)
    assert np.allclose(np.asarray(hnew), np.asarray(ref_h), atol=2e-4, rtol=2e-4)

    # single-step API (exactly the PyTorch forward signature)
    lp1, h1 = bahdanau_decoder_step(tokens[0], last_hidden, encoder_outputs, packed)
    lp1, h1 = jax.block_until_ready((lp1, h1))
    r_lp1, r_h1 = reference_step(tokens[0], last_hidden, encoder_outputs, params)
    assert np.allclose(np.asarray(lp1), np.asarray(r_lp1), atol=2e-4, rtol=2e-4)
    assert np.allclose(np.asarray(h1), np.asarray(r_h1), atol=2e-4, rtol=2e-4)

    print("KERNEL_OK")
</pallas_src>

<mosaic_0001>
module attributes {stable_mosaic.version = 11 : i64} {
  func.func @decoder_kernel(%arg0: i32, %arg1: i32, %arg2: memref<4x8xi32, #tpu.memory_space<smem>>, %arg3: memref<2x8x32xf32, #tpu.memory_space<vmem>>, %arg4: memref<8x8x32xf32, #tpu.memory_space<vmem>>, %arg5: memref<40x32xf32, #tpu.memory_space<vmem>>, %arg6: memref<164x96xf32, #tpu.memory_space<vmem>>, %arg7: memref<66x32xf32, #tpu.memory_space<vmem>>, %arg8: memref<33x128xf32, #tpu.memory_space<vmem>>, %arg9: memref<1x8x128xf32, #tpu.memory_space<vmem>>, %arg10: memref<2x8x32xf32, #tpu.memory_space<vmem>>, %arg11: memref<2x8x32xf32, #tpu.memory_space<vmem>>, %arg12: memref<8x8x32xf32, #tpu.memory_space<vmem>>) attributes {dimension_semantics = [#tpu.dimension_semantics<parallel>, #tpu.dimension_semantics<arbitrary>], iteration_bounds = array<i64: 1, 4>, scalar_prefetch = 1 : i64, scratch_operands = 2 : i64, tpu.core_type = #tpu.core_type<tc>, window_params = [{transform_indices = @transform_0, window_bounds = array<i64: 2, 8, 32>}, {transform_indices = @transform_1, window_bounds = array<i64: 8, 8, 32>}, {pipeline_mode = #tpu.pipeline_mode<synchronous>, transform_indices = @transform_2, window_bounds = array<i64: 40, 32>}, {pipeline_mode = #tpu.pipeline_mode<synchronous>, transform_indices = @transform_3, window_bounds = array<i64: 164, 96>}, {pipeline_mode = #tpu.pipeline_mode<synchronous>, transform_indices = @transform_4, window_bounds = array<i64: 66, 32>}, {pipeline_mode = #tpu.pipeline_mode<synchronous>, transform_indices = @transform_5, window_bounds = array<i64: 33, 128>}, {transform_indices = @transform_6, window_bounds = array<i64: 1, 8, 128>}, {transform_indices = @transform_7, window_bounds = array<i64: 2, 8, 32>}]} {
    %c0_i32 = arith.constant 0 : i32
    %0 = arith.cmpi eq, %arg1, %c0_i32 : i32
    %1 = arith.extui %0 : i1 to i32
    %c0_i32_0 = arith.constant 0 : i32
    %2 = arith.cmpi ne, %1, %c0_i32_0 : i32
    scf.if %2 {
      %c0_75 = arith.constant 0 : index
      %c0_76 = arith.constant 0 : index
      %c0_77 = arith.constant 0 : index
      %178 = vector.load %arg3[%c0_75, %c0_76, %c0_77] : memref<2x8x32xf32, #tpu.memory_space<vmem>>, vector<2x8x32xf32>
      %c0_78 = arith.constant 0 : index
      %c0_79 = arith.constant 0 : index
      %c0_80 = arith.constant 0 : index
      %179 = vector.load %arg11[%c0_78, %c0_79, %c0_80] : memref<2x8x32xf32, #tpu.memory_space<vmem>>, vector<2x8x32xf32>
      tpu.vector_store %arg11[%c0_78, %c0_79, %c0_80], %178 {strides = array<i32>} : memref<2x8x32xf32, #tpu.memory_space<vmem>>, vector<2x8x32xf32>,
      %c32_81 = arith.constant 32 : index
      %c0_82 = arith.constant 0 : index
      %180 = vector.load %arg7[%c32_81, %c0_82] : memref<66x32xf32, #tpu.memory_space<vmem>>, vector<32x32xf32>
      %c64_83 = arith.constant 64 : index
      %c0_84 = arith.constant 0 : index
      %181 = vector.load %arg7[%c64_83, %c0_84] : memref<66x32xf32, #tpu.memory_space<vmem>>, vector<1x32xf32>
      %c0_85 = arith.constant 0 : index
      %c0_86 = arith.constant 0 : index
      %c0_87 = arith.constant 0 : index
      %182 = vector.load %arg4[%c0_85, %c0_86, %c0_87] : memref<8x8x32xf32, #tpu.memory_space<vmem>>, vector<8x8x32xf32>
      %183 = vector.shape_cast %182 : vector<8x8x32xf32> to vector<64x32xf32>
      %cst_88 = arith.constant dense<0.000000e+00> : vector<64x32xf32>
      %184 = tpu.matmul %183, %180, %cst_88 {dimension_numbers = #tpu.dot_dimension_numbers<[1], [0], [0], [1], [0, 0, 1, 1], [], []>} : vector<64x32xf32>, vector<32x32xf32>, vector<64x32xf32> -> vector<64x32xf32>
      %185 = vector.broadcast %181 : vector<1x32xf32> to vector<64x32xf32>
      %186 = arith.addf %184, %185 : vector<64x32xf32>
      %187 = vector.shape_cast %186 : vector<64x32xf32> to vector<8x8x32xf32>
      %c0_89 = arith.constant 0 : index
      %c0_90 = arith.constant 0 : index
      %c0_91 = arith.constant 0 : index
      %188 = vector.load %arg12[%c0_89, %c0_90, %c0_91] : memref<8x8x32xf32, #tpu.memory_space<vmem>>, vector<8x8x32xf32>
      tpu.vector_store %arg12[%c0_89, %c0_90, %c0_91], %187 {strides = array<i32>} : memref<8x8x32xf32, #tpu.memory_space<vmem>>, vector<8x8x32xf32>,
    } else {
    }
    %c8_i32 = arith.constant 8 : i32
    %3 = arith.muli %arg0, %c8_i32 : i32
    %c0_i32_1 = arith.constant 0 : i32
    %4 = arith.addi %3, %c0_i32_1 : i32
    %5 = arith.index_cast %arg1 : i32 to index
    %6 = arith.index_cast %4 : i32 to index
    %7 = memref.load %arg2[%5, %6] : memref<4x8xi32, #tpu.memory_space<smem>>
    %8 = arith.index_cast %7 : i32 to index
    %c0 = arith.constant 0 : index
    %9 = vector.load %arg5[%8, %c0] : memref<40x32xf32, #tpu.memory_space<vmem>>, vector<1x32xf32>
    %c8_i32_2 = arith.constant 8 : i32
    %10 = arith.muli %arg0, %c8_i32_2 : i32
    %c1_i32 = arith.constant 1 : i32
    %11 = arith.addi %10, %c1_i32 : i32
    %12 = arith.index_cast %arg1 : i32 to index
    %13 = arith.index_cast %11 : i32 to index
    %14 = memref.load %arg2[%12, %13] : memref<4x8xi32, #tpu.memory_space<smem>>
    %15 = arith.index_cast %14 : i32 to index
    %c0_3 = arith.constant 0 : index
    %16 = vector.load %arg5[%15, %c0_3] : memref<40x32xf32, #tpu.memory_space<vmem>>, vector<1x32xf32>
    %c8_i32_4 = arith.constant 8 : i32
    %17 = arith.muli %arg0, %c8_i32_4 : i32
    %c2_i32 = arith.constant 2 : i32
    %18 = arith.addi %17, %c2_i32 : i32
    %19 = arith.index_cast %arg1 : i32 to index
    %20 = arith.index_cast %18 : i32 to index
    %21 = memref.load %arg2[%19, %20] : memref<4x8xi32, #tpu.memory_space<smem>>
    %22 = arith.index_cast %21 : i32 to index
    %c0_5 = arith.constant 0 : index
    %23 = vector.load %arg5[%22, %c0_5] : memref<40x32xf32, #tpu.memory_space<vmem>>, vector<1x32xf32>
    %c8_i32_6 = arith.constant 8 : i32
    %24 = arith.muli %arg0, %c8_i32_6 : i32
    %c3_i32 = arith.constant 3 : i32
    %25 = arith.addi %24, %c3_i32 : i32
    %26 = arith.index_cast %arg1 : i32 to index
    %27 = arith.index_cast %25 : i32 to index
    %28 = memref.load %arg2[%26, %27] : memref<4x8xi32, #tpu.memory_space<smem>>
    %29 = arith.index_cast %28 : i32 to index
    %c0_7 = arith.constant 0 : index
    %30 = vector.load %arg5[%29, %c0_7] : memref<40x32xf32, #tpu.memory_space<vmem>>, vector<1x32xf32>
    %c8_i32_8 = arith.constant 8 : i32
    %31 = arith.muli %arg0, %c8_i32_8 : i32
    %c4_i32 = arith.constant 4 : i32
    %32 = arith.addi %31, %c4_i32 : i32
    %33 = arith.index_cast %arg1 : i32 to index
    %34 = arith.index_cast %32 : i32 to index
    %35 = memref.load %arg2[%33, %34] : memref<4x8xi32, #tpu.memory_space<smem>>
    %36 = arith.index_cast %35 : i32 to index
    %c0_9 = arith.constant 0 : index
    %37 = vector.load %arg5[%36, %c0_9] : memref<40x32xf32, #tpu.memory_space<vmem>>, vector<1x32xf32>
    %c8_i32_10 = arith.constant 8 : i32
    %38 = arith.muli %arg0, %c8_i32_10 : i32
    %c5_i32 = arith.constant 5 : i32
    %39 = arith.addi %38, %c5_i32 : i32
    %40 = arith.index_cast %arg1 : i32 to index
    %41 = arith.index_cast %39 : i32 to index
    %42 = memref.load %arg2[%40, %41] : memref<4x8xi32, #tpu.memory_space<smem>>
    %43 = arith.index_cast %42 : i32 to index
    %c0_11 = arith.constant 0 : index
    %44 = vector.load %arg5[%43, %c0_11] : memref<40x32xf32, #tpu.memory_space<vmem>>, vector<1x32xf32>
    %c8_i32_12 = arith.constant 8 : i32
    %45 = arith.muli %arg0, %c8_i32_12 : i32
    %c6_i32 = arith.constant 6 : i32
    %46 = arith.addi %45, %c6_i32 : i32
    %47 = arith.index_cast %arg1 : i32 to index
    %48 = arith.index_cast %46 : i32 to index
    %49 = memref.load %arg2[%47, %48] : memref<4x8xi32, #tpu.memory_space<smem>>
    %50 = arith.index_cast %49 : i32 to index
    %c0_13 = arith.constant 0 : index
    %51 = vector.load %arg5[%50, %c0_13] : memref<40x32xf32, #tpu.memory_space<vmem>>, vector<1x32xf32>
    %c8_i32_14 = arith.constant 8 : i32
    %52 = arith.muli %arg0, %c8_i32_14 : i32
    %c7_i32 = arith.constant 7 : i32
    %53 = arith.addi %52, %c7_i32 : i32
    %54 = arith.index_cast %arg1 : i32 to index
    %55 = arith.index_cast %53 : i32 to index
    %56 = memref.load %arg2[%54, %55] : memref<4x8xi32, #tpu.memory_space<smem>>
    %57 = arith.index_cast %56 : i32 to index
    %c0_15 = arith.constant 0 : index
    %58 = vector.load %arg5[%57, %c0_15] : memref<40x32xf32, #tpu.memory_space<vmem>>, vector<1x32xf32>
    %59 = tpu.concatenate %9, %16, %23, %30, %37, %44, %51, %58 in 0 : vector<1x32xf32>, vector<1x32xf32>, vector<1x32xf32>, vector<1x32xf32>, vector<1x32xf32>, vector<1x32xf32>, vector<1x32xf32>, vector<1x32xf32> -> vector<8x32xf32>
    %c0_16 = arith.constant 0 : index
    %c0_17 = arith.constant 0 : index
    %60 = vector.load %arg7[%c0_16, %c0_17] : memref<66x32xf32, #tpu.memory_space<vmem>>, vector<32x32xf32>
    %c65 = arith.constant 65 : index
    %c0_18 = arith.constant 0 : index
    %61 = vector.load %arg7[%c65, %c0_18] : memref<66x32xf32, #tpu.memory_space<vmem>>, vector<1x32xf32>
    %c1 = arith.constant 1 : index
    %c0_19 = arith.constant 0 : index
    %c0_20 = arith.constant 0 : index
    %62 = vector.load %arg11[%c1, %c0_19, %c0_20] : memref<2x8x32xf32, #tpu.memory_space<vmem>>, vector<1x8x32xf32>
    %63 = vector.shape_cast %62 : vector<1x8x32xf32> to vector<8x32xf32>
    %cst = arith.constant dense<0.000000e+00> : vector<8x32xf32>
    %64 = tpu.matmul %63, %60, %cst {dimension_numbers = #tpu.dot_dimension_numbers<[1], [0], [0], [1], [0, 0, 1, 1], [], []>} : vector<8x32xf32>, vector<32x32xf32>, vector<8x32xf32> -> vector<8x32xf32>
    %65 = vector.shape_cast %64 : vector<8x32xf32> to vector<8x1x32xf32>
    %c0_21 = arith.constant 0 : index
    %c0_22 = arith.constant 0 : index
    %c0_23 = arith.constant 0 : index
    %66 = vector.load %arg12[%c0_21, %c0_22, %c0_23] : memref<8x8x32xf32, #tpu.memory_space<vmem>>, vector<8x8x32xf32>
    %67 = vector.broadcast %65 : vector<8x1x32xf32> to vector<8x8x32xf32>
    %68 = arith.addf %67, %66 : vector<8x8x32xf32>
    %69 = math.tanh %68 : vector<8x8x32xf32>
    %70 = vector.shape_cast %61 : vector<1x32xf32> to vector<1x1x32xf32>
    %71 = vector.broadcast %70 : vector<1x1x32xf32> to vector<8x8x32xf32>
    %72 = arith.mulf %69, %71 : vector<8x8x32xf32>
    %cst_24 = arith.constant dense<0.000000e+00> : vector<8x8xf32>
    %73 = vector.multi_reduction <add>, %72, %cst_24 [2] : vector<8x8x32xf32> to vector<8x8xf32>
    %cst_25 = arith.constant dense<0xFF800000> : vector<8xf32>
    %74 = vector.multi_reduction <maximumf>, %73, %cst_25 [1] : vector<8x8xf32> to vector<8xf32>
    %75 = vector.shape_cast %74 : vector<8xf32> to vector<8x1xf32>
    %76 = vector.broadcast %75 : vector<8x1xf32> to vector<8x8xf32>
    %77 = arith.subf %73, %76 : vector<8x8xf32>
    %78 = math.exp %77 : vector<8x8xf32>
    %cst_26 = arith.constant dense<0.000000e+00> : vector<8xf32>
    %79 = vector.multi_reduction <add>, %78, %cst_26 [1] : vector<8x8xf32> to vector<8xf32>
    %80 = vector.shape_cast %79 : vector<8xf32> to vector<8x1xf32>
    %81 = vector.broadcast %80 : vector<8x1xf32> to vector<8x8xf32>
    %82 = arith.divf %78, %81 : vector<8x8xf32>
    %83 = vector.shape_cast %82 : vector<8x8xf32> to vector<8x1x8xf32>
    %c0_27 = arith.constant 0 : index
    %c0_28 = arith.constant 0 : index
    %c0_29 = arith.constant 0 : index
    %84 = vector.load %arg4[%c0_27, %c0_28, %c0_29] : memref<8x8x32xf32, #tpu.memory_space<vmem>>, vector<8x8x32xf32>
    "tpu.trace_start"() <{level = 10 : i32, message = "bqt,bth->bqh"}> : () -> ()
    %cst_30 = arith.constant dense<0.000000e+00> : vector<8x1x32xf32>
    %85 = tpu.matmul %83, %84, %cst_30 {dimension_numbers = #tpu.dot_dimension_numbers<[2], [1], [1], [2], [0, 0, 0, 1, 1, 2], [0], [0]>} : vector<8x1x8xf32>, vector<8x8x32xf32>, vector<8x1x32xf32> -> vector<8x1x32xf32>
    "tpu.trace_stop"() : () -> ()
    %86 = vector.shape_cast %85 : vector<8x1x32xf32> to vector<8x32xf32>
    %87 = tpu.concatenate %59, %86 in 1 : vector<8x32xf32>, vector<8x32xf32> -> vector<8x64xf32>
    %c0_31 = arith.constant 0 : index
    %c0_32 = arith.constant 0 : index
    %88 = vector.load %arg6[%c0_31, %c0_32] : memref<164x96xf32, #tpu.memory_space<vmem>>, vector<64x96xf32>
    %c64 = arith.constant 64 : index
    %c0_33 = arith.constant 0 : index
    %89 = vector.load %arg6[%c64, %c0_33] : memref<164x96xf32, #tpu.memory_space<vmem>>, vector<32x96xf32>
    %c160 = arith.constant 160 : index
    %c0_34 = arith.constant 0 : index
    %90 = vector.load %arg6[%c160, %c0_34] : memref<164x96xf32, #tpu.memory_space<vmem>>, vector<1x96xf32>
    %c161 = arith.constant 161 : index
    %c0_35 = arith.constant 0 : index
    %91 = vector.load %arg6[%c161, %c0_35] : memref<164x96xf32, #tpu.memory_space<vmem>>, vector<1x96xf32>
    %c0_36 = arith.constant 0 : index
    %c0_37 = arith.constant 0 : index
    %c0_38 = arith.constant 0 : index
    %92 = vector.load %arg11[%c0_36, %c0_37, %c0_38] : memref<2x8x32xf32, #tpu.memory_space<vmem>>, vector<1x8x32xf32>
    %93 = vector.shape_cast %92 : vector<1x8x32xf32> to vector<8x32xf32>
    %cst_39 = arith.constant dense<0.000000e+00> : vector<8x96xf32>
    %94 = tpu.matmul %87, %88, %cst_39 {dimension_numbers = #tpu.dot_dimension_numbers<[1], [0], [0], [1], [0, 0, 1, 1], [], []>} : vector<8x64xf32>, vector<64x96xf32>, vector<8x96xf32> -> vector<8x96xf32>
    %95 = vector.broadcast %90 : vector<1x96xf32> to vector<8x96xf32>
    %96 = arith.addf %94, %95 : vector<8x96xf32>
    %cst_40 = arith.constant dense<0.000000e+00> : vector<8x96xf32>
    %97 = tpu.matmul %93, %89, %cst_40 {dimension_numbers = #tpu.dot_dimension_numbers<[1], [0], [0], [1], [0, 0, 1, 1], [], []>} : vector<8x32xf32>, vector<32x96xf32>, vector<8x96xf32> -> vector<8x96xf32>
    %98 = vector.broadcast %91 : vector<1x96xf32> to vector<8x96xf32>
    %99 = arith.addf %97, %98 : vector<8x96xf32>
    %100 = vector.extract_strided_slice %96 {offsets = [0, 0], sizes = [8, 64], strides = [1, 1]} : vector<8x96xf32> to vector<8x64xf32>
    %101 = vector.extract_strided_slice %99 {offsets = [0, 0], sizes = [8, 64], strides = [1, 1]} : vector<8x96xf32> to vector<8x64xf32>
    %102 = arith.addf %100, %101 : vector<8x64xf32>
    %103 = arith.negf %102 : vector<8x64xf32>
    %104 = math.exp %103 : vector<8x64xf32>
    %cst_41 = arith.constant 1.000000e+00 : f32
    %105 = vector.broadcast %cst_41 : f32 to vector<8x64xf32>
    %106 = arith.addf %105, %104 : vector<8x64xf32>
    %107 = arith.divf %105, %106 : vector<8x64xf32>
    %108 = vector.extract_strided_slice %107 {offsets = [0, 0], sizes = [8, 32], strides = [1, 1]} : vector<8x64xf32> to vector<8x32xf32>
    %109 = vector.extract_strided_slice %107 {offsets = [0, 32], sizes = [8, 32], strides = [1, 1]} : vector<8x64xf32> to vector<8x32xf32>
    %110 = vector.extract_strided_slice %96 {offsets = [0, 64], sizes = [8, 32], strides = [1, 1]} : vector<8x96xf32> to vector<8x32xf32>
    %111 = vector.extract_strided_slice %99 {offsets = [0, 64], sizes = [8, 32], strides = [1, 1]} : vector<8x96xf32> to vector<8x32xf32>
    %112 = arith.mulf %108, %111 : vector<8x32xf32>
    %113 = arith.addf %110, %112 : vector<8x32xf32>
    %114 = math.tanh %113 : vector<8x32xf32>
    %cst_42 = arith.constant 1.000000e+00 : f32
    %115 = vector.broadcast %cst_42 : f32 to vector<8x32xf32>
    %116 = arith.subf %115, %109 : vector<8x32xf32>
    %117 = arith.mulf %116, %114 : vector<8x32xf32>
    %118 = arith.mulf %109, %93 : vector<8x32xf32>
    %119 = arith.addf %117, %118 : vector<8x32xf32>
    %c0_43 = arith.constant 0 : index
    %c0_44 = arith.constant 0 : index
    %c0_45 = arith.constant 0 : index
    %120 = vector.load %arg11[%c0_43, %c0_44, %c0_45] : memref<2x8x32xf32, #tpu.memory_space<vmem>>, vector<1x8x32xf32>
    %121 = vector.shape_cast %120 : vector<1x8x32xf32> to vector<8x32xf32>
    %122 = vector.shape_cast %119 : vector<8x32xf32> to vector<1x8x32xf32>
    tpu.vector_store %arg11[%c0_43, %c0_44, %c0_45], %122 {strides = array<i32>} : memref<2x8x32xf32, #tpu.memory_space<vmem>>, vector<1x8x32xf32>,
    %c96 = arith.constant 96 : index
    %c0_46 = arith.constant 0 : index
    %123 = vector.load %arg6[%c96, %c0_46] : memref<164x96xf32, #tpu.memory_space<vmem>>, vector<32x96xf32>
    %c128 = arith.constant 128 : index
    %c0_47 = arith.constant 0 : index
    %124 = vector.load %arg6[%c128, %c0_47] : memref<164x96xf32, #tpu.memory_space<vmem>>, vector<32x96xf32>
    %c162 = arith.constant 162 : index
    %c0_48 = arith.constant 0 : index
    %125 = vector.load %arg6[%c162, %c0_48] : memref<164x96xf32, #tpu.memory_space<vmem>>, vector<1x96xf32>
    %c163 = arith.constant 163 : index
    %c0_49 = arith.constant 0 : index
    %126 = vector.load %arg6[%c163, %c0_49] : memref<164x96xf32, #tpu.memory_space<vmem>>, vector<1x96xf32>
    %c1_50 = arith.constant 1 : index
    %c0_51 = arith.constant 0 : index
    %c0_52 = arith.constant 0 : index
    %127 = vector.load %arg11[%c1_50, %c0_51, %c0_52] : memref<2x8x32xf32, #tpu.memory_space<vmem>>, vector<1x8x32xf32>
    %128 = vector.shape_cast %127 : vector<1x8x32xf32> to vector<8x32xf32>
    %cst_53 = arith.constant dense<0.000000e+00> : vector<8x96xf32>
    %129 = tpu.matmul %119, %123, %cst_53 {dimension_numbers = #tpu.dot_dimension_numbers<[1], [0], [0], [1], [0, 0, 1, 1], [], []>} : vector<8x32xf32>, vector<32x96xf32>, vector<8x96xf32> -> vector<8x96xf32>
    %130 = vector.broadcast %125 : vector<1x96xf32> to vector<8x96xf32>
    %131 = arith.addf %129, %130 : vector<8x96xf32>
    %cst_54 = arith.constant dense<0.000000e+00> : vector<8x96xf32>
    %132 = tpu.matmul %128, %124, %cst_54 {dimension_numbers = #tpu.dot_dimension_numbers<[1], [0], [0], [1], [0, 0, 1, 1], [], []>} : vector<8x32xf32>, vector<32x96xf32>, vector<8x96xf32> -> vector<8x96xf32>
    %133 = vector.broadcast %126 : vector<1x96xf32> to vector<8x96xf32>
    %134 = arith.addf %132, %133 : vector<8x96xf32>
    %135 = vector.extract_strided_slice %131 {offsets = [0, 0], sizes = [8, 64], strides = [1, 1]} : vector<8x96xf32> to vector<8x64xf32>
    %136 = vector.extract_strided_slice %134 {offsets = [0, 0], sizes = [8, 64], strides = [1, 1]} : vector<8x96xf32> to vector<8x64xf32>
    %137 = arith.addf %135, %136 : vector<8x64xf32>
    %138 = arith.negf %137 : vector<8x64xf32>
    %139 = math.exp %138 : vector<8x64xf32>
    %cst_55 = arith.constant 1.000000e+00 : f32
    %140 = vector.broadcast %cst_55 : f32 to vector<8x64xf32>
    %141 = arith.addf %140, %139 : vector<8x64xf32>
    %142 = arith.divf %140, %141 : vector<8x64xf32>
    %143 = vector.extract_strided_slice %142 {offsets = [0, 0], sizes = [8, 32], strides = [1, 1]} : vector<8x64xf32> to vector<8x32xf32>
    %144 = vector.extract_strided_slice %142 {offsets = [0, 32], sizes = [8, 32], strides = [1, 1]} : vector<8x64xf32> to vector<8x32xf32>
    %145 = vector.extract_strided_slice %131 {offsets = [0, 64], sizes = [8, 32], strides = [1, 1]} : vector<8x96xf32> to vector<8x32xf32>
    %146 = vector.extract_strided_slice %134 {offsets = [0, 64], sizes = [8, 32], strides = [1, 1]} : vector<8x96xf32> to vector<8x32xf32>
    %147 = arith.mulf %143, %146 : vector<8x32xf32>
    %148 = arith.addf %145, %147 : vector<8x32xf32>
    %149 = math.tanh %148 : vector<8x32xf32>
    %cst_56 = arith.constant 1.000000e+00 : f32
    %150 = vector.broadcast %cst_56 : f32 to vector<8x32xf32>
    %151 = arith.subf %150, %144 : vector<8x32xf32>
    %152 = arith.mulf %151, %149 : vector<8x32xf32>
    %153 = arith.mulf %144, %128 : vector<8x32xf32>
    %154 = arith.addf %152, %153 : vector<8x32xf32>
    %c1_57 = arith.constant 1 : index
    %c0_58 = arith.constant 0 : index
    %c0_59 = arith.constant 0 : index
    %155 = vector.load %arg11[%c1_57, %c0_58, %c0_59] : memref<2x8x32xf32, #tpu.memory_space<vmem>>, vector<1x8x32xf32>
    %156 = vector.shape_cast %155 : vector<1x8x32xf32> to vector<8x32xf32>
    %157 = vector.shape_cast %154 : vector<8x32xf32> to vector<1x8x32xf32>
    tpu.vector_store %arg11[%c1_57, %c0_58, %c0_59], %157 {strides = array<i32>} : memref<2x8x32xf32, #tpu.memory_space<vmem>>, vector<1x8x32xf32>,
    %c0_60 = arith.constant 0 : index
    %c0_61 = arith.constant 0 : index
    %c0_62 = arith.constant 0 : index
    %158 = vector.load %arg11[%c0_60, %c0_61, %c0_62] : memref<2x8x32xf32, #tpu.memory_space<vmem>>, vector<2x8x32xf32>
    %c0_63 = arith.constant 0 : index
    %c0_64 = arith.constant 0 : index
    %c0_65 = arith.constant 0 : index
    %159 = vector.load %arg10[%c0_63, %c0_64, %c0_65] : memref<2x8x32xf32, #tpu.memory_space<vmem>>, vector<2x8x32xf32>
    tpu.vector_store %arg10[%c0_63, %c0_64, %c0_65], %158 {strides = array<i32>} : memref<2x8x32xf32, #tpu.memory_space<vmem>>, vector<2x8x32xf32>,
    %c0_66 = arith.constant 0 : index
    %c0_67 = arith.constant 0 : index
    %160 = vector.load %arg8[%c0_66, %c0_67] : memref<33x128xf32, #tpu.memory_space<vmem>>, vector<32x128xf32>
    %c32 = arith.constant 32 : index
    %c0_68 = arith.constant 0 : index
    %161 = vector.load %arg8[%c32, %c0_68] : memref<33x128xf32, #tpu.memory_space<vmem>>, vector<1x128xf32>
    %cst_69 = arith.constant dense<0.000000e+00> : vector<8x128xf32>
    %162 = tpu.matmul %154, %160, %cst_69 {dimension_numbers = #tpu.dot_dimension_numbers<[1], [0], [0], [1], [0, 0, 1, 1], [], []>} : vector<8x32xf32>, vector<32x128xf32>, vector<8x128xf32> -> vector<8x128xf32>
    %163 = vector.broadcast %161 : vector<1x128xf32> to vector<8x128xf32>
    %164 = arith.addf %162, %163 : vector<8x128xf32>
    %cst_70 = arith.constant dense<0xFF800000> : vector<8xf32>
    %165 = vector.multi_reduction <maximumf>, %164, %cst_70 [1] : vector<8x128xf32> to vector<8xf32>
    %166 = vector.shape_cast %165 : vector<8xf32> to vector<8x1xf32>
    %167 = vector.broadcast %166 : vector<8x1xf32> to vector<8x128xf32>
    %168 = arith.subf %164, %167 : vector<8x128xf32>
    %169 = math.exp %168 : vector<8x128xf32>
    %cst_71 = arith.constant dense<0.000000e+00> : vector<8xf32>
    %170 = vector.multi_reduction <add>, %169, %cst_71 [1] : vector<8x128xf32> to vector<8xf32>
    %171 = vector.shape_cast %170 : vector<8xf32> to vector<8x1xf32>
    %172 = math.log %171 : vector<8x1xf32>
    %173 = vector.broadcast %172 : vector<8x1xf32> to vector<8x128xf32>
    %174 = arith.subf %168, %173 : vector<8x128xf32>
    %c0_72 = arith.constant 0 : index
    %c0_73 = arith.constant 0 : index
    %c0_74 = arith.constant 0 : index
    %175 = vector.load %arg9[%c0_72, %c0_73, %c0_74] : memref<1x8x128xf32, #tpu.memory_space<vmem>>, vector<1x8x128xf32>
    %176 = vector.shape_cast %175 : vector<1x8x128xf32> to vector<8x128xf32>
    %177 = vector.shape_cast %174 : vector<8x128xf32> to vector<1x8x128xf32>
    tpu.vector_store %arg9[%c0_72, %c0_73, %c0_74], %177 {strides = array<i32>} : memref<1x8x128xf32, #tpu.memory_space<vmem>>, vector<1x8x128xf32>,
    return
  }
  func.func @transform_0(%arg0: i32, %arg1: i32, %arg2: memref<4x8xi32, #tpu.memory_space<smem>>) -> (i32, i32, i32) {
    %c0_i32 = arith.constant 0 : i32
    %c0_i32_0 = arith.constant 0 : i32
    %c0_i32_1 = arith.constant 0 : i32
    return %c0_i32, %arg0, %c0_i32_0 : i32, i32, i32
  }
  func.func @transform_1(%arg0: i32, %arg1: i32, %arg2: memref<4x8xi32, #tpu.memory_space<smem>>) -> (i32, i32, i32) {
    %c0_i32 = arith.constant 0 : i32
    %c0_i32_0 = arith.constant 0 : i32
    %c0_i32_1 = arith.constant 0 : i32
    return %arg0, %c0_i32, %c0_i32_0 : i32, i32, i32
  }
  func.func @transform_2(%arg0: i32, %arg1: i32, %arg2: memref<4x8xi32, #tpu.memory_space<smem>>) -> (i32, i32) {
    %c0_i32 = arith.constant 0 : i32
    %c0_i32_0 = arith.constant 0 : i32
    %c0_i32_1 = arith.constant 0 : i32
    return %c0_i32, %c0_i32_0 : i32, i32
  }
  func.func @transform_3(%arg0: i32, %arg1: i32, %arg2: memref<4x8xi32, #tpu.memory_space<smem>>) -> (i32, i32) {
    %c0_i32 = arith.constant 0 : i32
    %c0_i32_0 = arith.constant 0 : i32
    %c0_i32_1 = arith.constant 0 : i32
    return %c0_i32, %c0_i32_0 : i32, i32
  }
  func.func @transform_4(%arg0: i32, %arg1: i32, %arg2: memref<4x8xi32, #tpu.memory_space<smem>>) -> (i32, i32) {
    %c0_i32 = arith.constant 0 : i32
    %c0_i32_0 = arith.constant 0 : i32
    %c0_i32_1 = arith.constant 0 : i32
    return %c0_i32, %c0_i32_0 : i32, i32
  }
  func.func @transform_5(%arg0: i32, %arg1: i32, %arg2: memref<4x8xi32, #tpu.memory_space<smem>>) -> (i32, i32) {
    %c0_i32 = arith.constant 0 : i32
    %c0_i32_0 = arith.constant 0 : i32
    %c0_i32_1 = arith.constant 0 : i32
    return %c0_i32, %c0_i32_0 : i32, i32
  }
  func.func @transform_6(%arg0: i32, %arg1: i32, %arg2: memref<4x8xi32, #tpu.memory_space<smem>>) -> (i32, i32, i32) {
    %c0_i32 = arith.constant 0 : i32
    %c0_i32_0 = arith.constant 0 : i32
    return %arg1, %arg0, %c0_i32 : i32, i32, i32
  }
  func.func @transform_7(%arg0: i32, %arg1: i32, %arg2: memref<4x8xi32, #tpu.memory_space<smem>>) -> (i32, i32, i32) {
    %c0_i32 = arith.constant 0 : i32
    %c0_i32_0 = arith.constant 0 : i32
    %c0_i32_1 = arith.constant 0 : i32
    return %c0_i32, %arg0, %c0_i32_0 : i32, i32, i32
  }
}

</mosaic_0001>

<llo_original>
// kernel: tpu_custom_call.1
$region0: #{tpu_custom_call.1}
  #allocation0 [shape = 'u32[]', space=smem, size = 0x4, offset = 0x4, fixed_abs, tag = 'smem constant byte address 0x4 - core index']
  #allocation1 [shape = 'u32[144,128]{1,0:T(1,128)}', space=vmem, size = 0x12000, scoped, tag = 'internal scratch']
  #allocation2 [shape = 'f32[2,8,32]{2,1,0:T(8,128)}', space=vmem, size = 0x2000, scoped, tag = 'scratch operand']
  #allocation3 [shape = 'f32[8,8,32]{2,1,0:T(8,128)}', space=vmem, size = 0x8000, scoped, tag = 'scratch operand']
  #allocation4 [shape = 's32[1]{0}', space=sflag, size = 0x4, scoped, tag = 'scoped memory for tpu_custom_call.1']
  #allocation5 [shape = 'u8[2048]{0}', space=smem, size = 0x800, scoped, tag = 'prefetched SMEM operand 0']
  %s0 = inlined_call_operand.vmem [shape: s32[4,8], index: 0, kind: input, shape index: {}]
  %s1 = inlined_call_operand.hbm [shape: f32[2,8,32], index: 1, kind: input, shape index: {}]
  %s2 = inlined_call_operand.hbm [shape: f32[8,8,32], index: 2, kind: input, shape index: {}]
  %s3 = inlined_call_operand.vmem [shape: f32[40,32], index: 3, kind: input, shape index: {}]
  %s4 = inlined_call_operand.vmem [shape: f32[164,96], index: 4, kind: input, shape index: {}]
  %s5 = inlined_call_operand.vmem [shape: f32[66,32], index: 5, kind: input, shape index: {}]
  %s6 = inlined_call_operand.hbm [shape: f32[33,128], index: 6, kind: input, shape index: {}]
  %s7 = inlined_call_operand.hbm [shape: f32[4,8,128], index: 7, kind: output, shape index: {0}]
  %s8 = inlined_call_operand.hbm [shape: f32[2,8,32], index: 8, kind: output, shape index: {1}]
  %9 = xla_tuple %s7, %s8
  %s10 = sld [smem:[#allocation0]]
  $region81: #{tpu_custom_call.1} parent=0
    _
  %s12 = ssub.s32 1, %s10
  %s13 = scalar_select 0, %s12, %s10
  %s14 = sshll.u32 %s0, 4
  %s15 = int_to_ptr.vmem [resolvable:$true] %s14
  %17 = dma.vmem_to_smem %s15, 64, [#allocation5], [#allocation4]
  %18 = dma.done [#allocation4], 64
  %19 = sfence
  $region1: #{tpu_custom_call.1} parent=0
    #allocation6 [shape = 'u8[8192]{0}', space=vmem, size = 0x2000, scoped, tag = 'input window, operand 1, single buffered']
    #allocation7 [shape = 's32[2]{0}', space=sflag, size = 0x8, scoped, tag = 'scoped memory for tpu_custom_call.1']
    #allocation8 [shape = 's32[2]{0}', space=sflag, size = 0x8, scoped, tag = 'scoped memory for tpu_custom_call.1']
    #allocation9 [shape = 'u8[32768]{0}', space=vmem, size = 0x8000, scoped, tag = 'input window, operand 2, single buffered']
    #allocation10 [shape = 's32[1]{0}', space=sflag, size = 0x4, scoped, tag = 'scoped memory for tpu_custom_call.1']
    #allocation11 [shape = 'u8[20480]{0}', space=vmem, size = 0x5000, scoped, tag = 'input window, operand 6, single buffered']
    #allocation12 [shape = 'u8[8192]{0}', space=vmem, size = 0x2000, scoped, tag = 'output window, operand 0']
    #allocation13 [shape = 'u8[8192]{0}', space=vmem, size = 0x2000, scoped, tag = 'output window, operand 1, single buffered']
    #allocation14 [shape = 's32[1]{0}', space=sflag, size = 0x4, scoped, tag = 'scoped memory for tpu_custom_call.1']
    %20 = vsyncpa [#allocation7], 0
    %21 = vsyncpa [#allocation10], 0
    %22 = vsyncpa [#allocation8], 0
    %s23 = scalar_lea.sflag [#allocation8], 1
    %24 = vsyncpa %s23, 0
    %25 = vsyncpa [#allocation14], 0
    loop: start=0, step=1, limit=6
    $region2: #{tpu_custom_call.1} parent=1 // loop_pre_header
      _
    $region3: #{tpu_custom_call.1} parent=1 // loop_header
      %s27 = sphi 0, %s31
      %p28 = scmp.ge.s32.totalorder %s27, 6
      %s34 = sphi 0, %s46
      %s35 = sphi 0, %s42
      %s36 = sphi 0, %s34
      %s37 = sphi 0, %s35
      %s38 = sphi 0, %s36
      %s39 = sphi 0, %s37
      %s49 = sphi 0, %s51
      %s52 = sphi 0, %s49
      %s53 = sphi 0, %s52
      %s69 = sphi 0, %s53
      %s75 = sphi 0, %s77
      %s78 = sphi 0, %s75
      %s79 = sphi 0, %s78
      %s95 = sphi 0, %s79
      %s99 = sphi 0, %s99
      %s101 = sphi 0, %s99
      %s102 = sphi 0, %s101
      %s116 = sphi 0, %s102
      %s120 = sphi 0, %s120
      %s122 = sphi 0, %s120
      %s123 = sphi 0, %s122
      %s137 = sphi 0, %s123
      %s141 = sphi 0, %s141
      %s143 = sphi 0, %s141
      %s144 = sphi 0, %s143
      %s158 = sphi 0, %s144
      %s162 = sphi 0, %s162
      %s164 = sphi 0, %s162
      %s165 = sphi 0, %s164
      %s179 = sphi 0, %s165
      %s187 = sphi 0, %s189
      %s190 = sphi 0, %s187
      %s191 = sphi 0, %s190
      %s207 = sphi 0, %s191
      %s213 = sphi 0, %s215
      %s216 = sphi 0, %s213
      %s217 = sphi 0, %s216
      %s233 = sphi 0, %s217
    $region4: #{tpu_custom_call.1} parent=1 // loop_header_branch
      %30 = sbr.rel (%p28) target = $region8
    $region5: #{tpu_custom_call.1} parent=1 // loop_body
      %s32 = ssub.s32 %s27, 1
      %s33 = ssub.s32 %s27, 2
      %s40 = sadd.s32 1, %s35
      %p41 = scmp.ge.s32.totalorder %s40, 4
      %s42 = scalar_select %p41, 0, %s40
      %s43 = sadd.s32 1, %s34
      %s44 = scalar_select %p41, %s43, %s34
      %p45 = scmp.ge.s32.totalorder %s44, 1
      %s46 = scalar_select %p45, 0, %s44
      %s47 = ssub.s32 %s34, %s46
      %p48 = scmp.eq.s32.totalorder %s47, 0
      %s50 = sadd.s32 %s49, 1
      %s51 = scalar_select %p48, %s49, %s50
      %p54 = pneg %p48
      %p55 = scmp.eq.s32.totalorder %s27, 3
      %p56 = por %p54, %p55
      %p57 = scmp.ne.s32.totalorder %s49, %s52
      %p58 = scmp.eq.s32.totalorder %s27, 0
      %p59 = por %p57, %p58
      %p60 = scmp.ne.s32.totalorder %s49, %s52
      %p61 = scmp.eq.s32.totalorder %s32, 3
      %p62 = por %p60, %p61
      %p63 = scmp.ne.s32.totalorder %s52, %s53
      %p64 = scmp.eq.s32.totalorder %s32, 0
      %p65 = por %p63, %p64
      %p66 = scmp.ne.s32.totalorder %s52, %s53
      %p67 = scmp.eq.s32.totalorder %s33, 3
      %p68 = por %p66, %p67
      %p70 = scmp.ne.s32.totalorder %s53, %s69
      %p71 = scmp.eq.s32.totalorder %s33, 0
      %p72 = por %p70, %p71
      %s73 = ssub.s32 %s34, %s46
      %p74 = scmp.eq.s32.totalorder %s73, 0
      %s76 = sadd.s32 %s75, 1
      %s77 = scalar_select %p74, %s75, %s76
      %p80 = pneg %p74
      %p81 = scmp.eq.s32.totalorder %s27, 3
      %p82 = por %p80, %p81
      %p83 = scmp.ne.s32.totalorder %s75, %s78
      %p84 = scmp.eq.s32.totalorder %s27, 0
      %p85 = por %p83, %p84
      %p86 = scmp.ne.s32.totalorder %s75, %s78
      %p87 = scmp.eq.s32.totalorder %s32, 3
      %p88 = por %p86, %p87
      %p89 = scmp.ne.s32.totalorder %s78, %s79
      %p90 = scmp.eq.s32.totalorder %s32, 0
      %p91 = por %p89, %p90
      %p92 = scmp.ne.s32.totalorder %s78, %s79
      %p93 = scmp.eq.s32.totalorder %s33, 3
      %p94 = por %p92, %p93
      %p96 = scmp.ne.s32.totalorder %s79, %s95
      %p97 = scmp.eq.s32.totalorder %s33, 0
      %p98 = por %p96, %p97
      %s100 = sadd.s32 %s99, 1
      %p103 = scmp.eq.s32.totalorder %s27, 3
      %p104 = scmp.ne.s32.totalorder %s99, %s101
      %p105 = scmp.eq.s32.totalorder %s27, 0
      %p106 = por %p104, %p105
      %p107 = scmp.ne.s32.totalorder %s99, %s101
      %p108 = scmp.eq.s32.totalorder %s32, 3
      %p109 = por %p107, %p108
      %p110 = scmp.ne.s32.totalorder %s101, %s102
      %p111 = scmp.eq.s32.totalorder %s32, 0
      %p112 = por %p110, %p111
      %p113 = scmp.ne.s32.totalorder %s101, %s102
      %p114 = scmp.eq.s32.totalorder %s33, 3
      %p115 = por %p113, %p114
      %p117 = scmp.ne.s32.totalorder %s102, %s116
      %p118 = scmp.eq.s32.totalorder %s33, 0
      %p119 = por %p117, %p118
      %s121 = sadd.s32 %s120, 1
      %p124 = scmp.eq.s32.totalorder %s27, 3
      %p125 = scmp.ne.s32.totalorder %s120, %s122
      %p126 = scmp.eq.s32.totalorder %s27, 0
      %p127 = por %p125, %p126
      %p128 = scmp.ne.s32.totalorder %s120, %s122
      %p129 = scmp.eq.s32.totalorder %s32, 3
      %p130 = por %p128, %p129
      %p131 = scmp.ne.s32.totalorder %s122, %s123
      %p132 = scmp.eq.s32.totalorder %s32, 0
      %p133 = por %p131, %p132
      %p134 = scmp.ne.s32.totalorder %s122, %s123
      %p135 = scmp.eq.s32.totalorder %s33, 3
      %p136 = por %p134, %p135
      %p138 = scmp.ne.s32.totalorder %s123, %s137
      %p139 = scmp.eq.s32.totalorder %s33, 0
      %p140 = por %p138, %p139
      %s142 = sadd.s32 %s141, 1
      %p145 = scmp.eq.s32.totalorder %s27, 3
      %p146 = scmp.ne.s32.totalorder %s141, %s143
      %p147 = scmp.eq.s32.totalorder %s27, 0
      %p148 = por %p146, %p147
      %p149 = scmp.ne.s32.totalorder %s141, %s143
      %p150 = scmp.eq.s32.totalorder %s32, 3
      %p151 = por %p149, %p150
      %p152 = scmp.ne.s32.totalorder %s143, %s144
      %p153 = scmp.eq.s32.totalorder %s32, 0
      %p154 = por %p152, %p153
      %p155 = scmp.ne.s32.totalorder %s143, %s144
      %p156 = scmp.eq.s32.totalorder %s33, 3
      %p157 = por %p155, %p156
      %p159 = scmp.ne.s32.totalorder %s144, %s158
      %p160 = scmp.eq.s32.totalorder %s33, 0
      %p161 = por %p159, %p160
      %s163 = sadd.s32 %s162, 1
      %p166 = scmp.eq.s32.totalorder %s27, 3
      %p167 = scmp.ne.s32.totalorder %s162, %s164
      %p168 = scmp.eq.s32.totalorder %s27, 0
      %p169 = por %p167, %p168
      %p170 = scmp.ne.s32.totalorder %s162, %s164
      %p171 = scmp.eq.s32.totalorder %s32, 3
      %p172 = por %p170, %p171
      %p173 = scmp.ne.s32.totalorder %s164, %s165
      %p174 = scmp.eq.s32.totalorder %s32, 0
      %p175 = por %p173, %p174
      %p176 = scmp.ne.s32.totalorder %s164, %s165
      %p177 = scmp.eq.s32.totalorder %s33, 3
      %p178 = por %p176, %p177
      %p180 = scmp.ne.s32.totalorder %s165, %s179
      %p181 = scmp.eq.s32.totalorder %s33, 0
      %p182 = por %p180, %p181
      %s183 = ssub.s32 %s35, %s42
      %s184 = ssub.s32 %s34, %s46
      %s185 = sor.u32 %s183, %s184
      %p186 = scmp.eq.s32.totalorder %s185, 0
      %s188 = sadd.s32 %s187, 1
      %s189 = scalar_select %p186, %s187, %s188
      %p192 = pneg %p186
      %p193 = scmp.eq.s32.totalorder %s27, 3
      %p194 = por %p192, %p193
      %p195 = scmp.ne.s32.totalorder %s187, %s190
      %p196 = scmp.eq.s32.totalorder %s27, 0
      %p197 = por %p195, %p196
      %p198 = scmp.ne.s32.totalorder %s187, %s190
      %p199 = scmp.eq.s32.totalorder %s32, 3
      %p200 = por %p198, %p199
      %p201 = scmp.ne.s32.totalorder %s190, %s191
      %p202 = scmp.eq.s32.totalorder %s32, 0
      %p203 = por %p201, %p202
      %p204 = scmp.ne.s32.totalorder %s190, %s191
      %p205 = scmp.eq.s32.totalorder %s33, 3
      %p206 = por %p204, %p205
      %p208 = scmp.ne.s32.totalorder %s191, %s207
      %p209 = scmp.eq.s32.totalorder %s33, 0
      %p210 = por %p208, %p209
      %s211 = ssub.s32 %s34, %s46
      %p212 = scmp.eq.s32.totalorder %s211, 0
      %s214 = sadd.s32 %s213, 1
      %s215 = scalar_select %p212, %s213, %s214
      %p218 = pneg %p212
      %p219 = scmp.eq.s32.totalorder %s27, 3
      %p220 = por %p218, %p219
      %p221 = scmp.ne.s32.totalorder %s213, %s216
      %p222 = scmp.eq.s32.totalorder %s27, 0
      %p223 = por %p221, %p222
      %p224 = scmp.ne.s32.totalorder %s213, %s216
      %p225 = scmp.eq.s32.totalorder %s32, 3
      %p226 = por %p224, %p225
      %p227 = scmp.ne.s32.totalorder %s216, %s217
      %p228 = scmp.eq.s32.totalorder %s32, 0
      %p229 = por %p227, %p228
      %p230 = scmp.ne.s32.totalorder %s216, %s217
      %p231 = scmp.eq.s32.totalorder %s33, 3
      %p232 = por %p230, %p231
      %p234 = scmp.ne.s32.totalorder %s217, %s233
      %p235 = scmp.eq.s32.totalorder %s33, 0
      %p236 = por %p234, %p235
      %p237 = scmp.le.s32.totalorder 1, %s27
      %p238 = scmp.lt.s32.totalorder %s27, 5
      %p239 = pnand %p237, %p238
      %p240 = pneg %p239
      // Predicated region
      $region9: #{tpu_custom_call.1} parent=5 // pred_check
        _
      $region10: #{tpu_custom_call.1} parent=5 // pred_check_branch
        %242 = sbr.rel (%p239) target = $region12
      $region11: #{tpu_custom_call.1} parent=5 // pred_region
        %s243 = ssub.s32 %s27, 1
        // Predicated region
        $region13: #{tpu_custom_call.1} parent=11 // pred_check
          %p244 = pneg %p65
        $region14: #{tpu_custom_call.1} parent=11 // pred_check_branch
          %246 = sbr.rel (%p244) target = $region16
        $region15: #{tpu_custom_call.1} parent=11 // pred_region
          %s248 = ssub.s32 256, 256
          %249 = vsyncadd [#allocation7], %s248
          %s250 = smul.addr %s36, 128
          %s251 = scalar_lea.hbm %s1, %s250
          %s252 = sshll.u32 [#allocation6], 4
          %s253 = int_to_ptr.vmem [resolvable:$true] %s252
          %258 = dma.hbm_to_vmem [thread:$0]  %s251, 256, %s253, [#allocation7], 128, 128, 8
        $region16: #{tpu_custom_call.1} parent=11 // pred_fallthru
          _
        // Predicated region
        $region17: #{tpu_custom_call.1} parent=11 // pred_check
          %p259 = pneg %p91
        $region18: #{tpu_custom_call.1} parent=11 // pred_check_branch
          %261 = sbr.rel (%p259) target = $region20
        $region19: #{tpu_custom_call.1} parent=11 // pred_region
          %s262 = smul.u32 8, %s36
          %s264 = ssub.s32 1024, 1024
          %265 = vsyncadd [#allocation10], %s264
          %s266 = smul.addr %s262, 128
          %s267 = scalar_lea.hbm %s2, %s266
          %s268 = sshll.u32 [#allocation9], 4
          %s269 = int_to_ptr.vmem [resolvable:$true] %s268
          %274 = dma.hbm_to_vmem [thread:$0]  %s267, 1024, %s269, [#allocation10], 128, 128, 8
        $region20: #{tpu_custom_call.1} parent=11 // pred_fallthru
          _
        // Predicated region
        $region21: #{tpu_custom_call.1} parent=11 // pred_check
          %p275 = pneg %p112
        $region22: #{tpu_custom_call.1} parent=11 // pred_check_branch
          %277 = sbr.rel (%p275) target = $region24
        $region23: #{tpu_custom_call.1} parent=11 // pred_region
          _
        $region24: #{tpu_custom_call.1} parent=11 // pred_fallthru
          _
        // Predicated region
        $region25: #{tpu_custom_call.1} parent=11 // pred_check
          %p278 = pneg %p133
        $region26: #{tpu_custom_call.1} parent=11 // pred_check_branch
          %280 = sbr.rel (%p278) target = $region28
        $region27: #{tpu_custom_call.1} parent=11 // pred_region
          _
        $region28: #{tpu_custom_call.1} parent=11 // pred_fallthru
          _
        // Predicated region
        $region29: #{tpu_custom_call.1} parent=11 // pred_check
          %p281 = pneg %p154
        $region30: #{tpu_custom_call.1} parent=11 // pred_check_branch
          %283 = sbr.rel (%p281) target = $region32
        $region31: #{tpu_custom_call.1} parent=11 // pred_region
          _
        $region32: #{tpu_custom_call.1} parent=11 // pred_fallthru
          _
        // Predicated region
        $region33: #{tpu_custom_call.1} parent=11 // pred_check
          %p284 = pneg %p175
        $region34: #{tpu_custom_call.1} parent=11 // pred_check_branch
          %286 = sbr.rel (%p284) target = $region36
        $region35: #{tpu_custom_call.1} parent=11 // pred_region
          %s288 = ssub.s32 640, 640
          %289 = vsyncadd [#allocation10], %s288
          %s290 = sshll.u32 [#allocation11], 4
          %s291 = int_to_ptr.vmem [resolvable:$true] %s290
          %296 = dma.hbm_to_vmem [thread:$0]  %s6, 640, %s291, [#allocation10], 128, 128, 8
        $region36: #{tpu_custom_call.1} parent=11 // pred_fallthru
          _
      $region12: #{tpu_custom_call.1} parent=5 // pred_fallthru
        _
      %p297 = scmp.lt.s32.totalorder %s27, 4
      // Predicated region
      $region37: #{tpu_custom_call.1} parent=5 // pred_check
        %p298 = pneg %p297
      $region38: #{tpu_custom_call.1} parent=5 // pred_check_branch
        %300 = sbr.rel (%p298) target = $region40
      $region39: #{tpu_custom_call.1} parent=5 // pred_region
        _
      $region40: #{tpu_custom_call.1} parent=5 // pred_fallthru
        _
      %p301 = scmp.le.s32.totalorder 1, %s27
      %p302 = scmp.lt.s32.totalorder %s27, 5
      %p303 = pnand %p301, %p302
      %p304 = pneg %p303
      // Predicated region
      $region41: #{tpu_custom_call.1} parent=5 // pred_check
        _
      $region42: #{tpu_custom_call.1} parent=5 // pred_check_branch
        %306 = sbr.rel (%p303) target = $region44
      $region43: #{tpu_custom_call.1} parent=5 // pred_region
        %s307 = ssub.s32 %s27, 1
        // Predicated region
        $region45: #{tpu_custom_call.1} parent=43 // pred_check
          %p308 = pneg %p65
        $region46: #{tpu_custom_call.1} parent=43 // pred_check_branch
          %310 = sbr.rel (%p308) target = $region48
        $region47: #{tpu_custom_call.1} parent=43 // pred_region
          %311 = dma.done [#allocation7], 256
        $region48: #{tpu_custom_call.1} parent=43 // pred_fallthru
          _
        // Predicated region
        $region49: #{tpu_custom_call.1} parent=43 // pred_check
          %p312 = pneg %p91
        $region50: #{tpu_custom_call.1} parent=43 // pred_check_branch
          %314 = sbr.rel (%p312) target = $region52
        $region51: #{tpu_custom_call.1} parent=43 // pred_region
          %315 = dma.done [#allocation10], 1024
        $region52: #{tpu_custom_call.1} parent=43 // pred_fallthru
          _
        // Predicated region
        $region53: #{tpu_custom_call.1} parent=43 // pred_check
          %p316 = pneg %p175
        $region54: #{tpu_custom_call.1} parent=43 // pred_check_branch
          %318 = sbr.rel (%p316) target = $region56
        $region55: #{tpu_custom_call.1} parent=43 // pred_region
          %319 = dma.done [#allocation10], 640
        $region56: #{tpu_custom_call.1} parent=43 // pred_fallthru
          _
        %p320 = pneg %p65
        %p321 = pneg %p62
        %p322 = pneg %p91
        %p323 = pneg %p88
        %p324 = pneg %p112
        %p325 = pneg %p109
        %p326 = pneg %p133
        %p327 = pneg %p130
        %p328 = pneg %p154
        %p329 = pneg %p151
        %p330 = pneg %p175
        %p331 = pneg %p172
        %p332 = pneg %p203
        %p333 = pneg %p200
        %s334 = sand.u32 %s190, 1
        %s335 = scalar_lea.sflag [#allocation8], %s334
        %s336 = sand.u32 %s190, 1
        %s337 = smul.addr %s336, 8
        %s338 = scalar_lea.vmem [#allocation12], %s337
        %p339 = pneg %p229
        %p340 = pneg %p226
        %s341 = smul.u32 8, %s36
        %p342 = scmp.eq.s32.totalorder %s37, 0
        // Predicated region
        $region57: #{tpu_custom_call.1} parent=43 // pred_check
          %p343 = pneg %p342
        $region58: #{tpu_custom_call.1} parent=43 // pred_check_branch
          %345 = sbr.rel (%p343) target = $region60
        $region59: #{tpu_custom_call.1} parent=43 // pred_region
          %v346 = vld [vmem:[#allocation6] sm:$0xff]
          %v347 = vld [vmem:[#allocation6 + $0x8] sm:$0xff]
          %vm348 = vcmask 261120
          %349 = vst.msk [vmem:[#allocation2] sm:$0xff] %vm348, %v346
          %350 = vst.msk [vmem:[#allocation2 + $0x8] sm:$0xff] %vm348, %v347
          %v351 = vld [vmem:[%s5 + $0x20] sm:$0xff]
          %v352 = vld [vmem:[%s5 + $0x28] sm:$0xff]
          %v353 = vld [vmem:[%s5 + $0x30] sm:$0xff]
          %v354 = vld [vmem:[%s5 + $0x38] sm:$0xff]
          %v355 = vld [vmem:[%s5 + $0x40] sm:$0x1]
          %v356 = vld [vmem:[#allocation9] sm:$0xff]
          %v357 = vld [vmem:[#allocation9 + $0x8] sm:$0xff]
          %v358 = vld [vmem:[#allocation9 + $0x10] sm:$0xff]
          %v359 = vld [vmem:[#allocation9 + $0x18] sm:$0xff]
          %v360 = vld [vmem:[#allocation9 + $0x20] sm:$0xff]
          %v361 = vld [vmem:[#allocation9 + $0x28] sm:$0xff]
          %v362 = vld [vmem:[#allocation9 + $0x30] sm:$0xff]
          %v363 = vld [vmem:[#allocation9 + $0x38] sm:$0xff]
          %v364 = vlaneseq
          %v365 = vshrl.u32 %v364, 7
          %v366 = vsub.s32 0, %v365
          %v367 = vrot.slane %v355, %v366
          %v369 = vsel %vm348, %v356, 0
          %v372 = vsel %vm348, %v357, 0
          %v375 = vsel %vm348, %v358, 0
          %v378 = vsel %vm348, %v359, 0
          %v381 = vsel %vm348, %v360, 0
          %v384 = vsel %vm348, %v361, 0
          %v387 = vsel %vm348, %v362, 0
          %v390 = vsel %vm348, %v363, 0
          %392 = vmatprep.subr.mxu0 0.0
          %393 = vmatpush1.msra.mxu0 0.0
          %394 = vmatprep.subr.mxu0 0.0
          %395 = vmatpush1.msra.mxu0 0.0
          %396 = vmatprep.subr.mxu0 0.0
          %397 = vmatpush1.msra.mxu0 0.0
          %398 = vmatprep.subr.mxu0 0.0
          %399 = vmatpush1.msra.mxu0 0.0
          %400 = vmatprep.subr.mxu0 0.0
          %401 = vmatpush1.msra.mxu0 0.0
          %402 = vmatprep.subr.mxu0 0.0
          %403 = vmatpush1.msra.mxu0 0.0
          %404 = vmatprep.subr.mxu0 0.0
          %405 = vmatpush1.msra.mxu0 0.0
          %406 = vmatprep.subr.mxu0 0.0
          %407 = vmatpush1.msra.mxu0 0.0
          %408 = vmatprep.subr.mxu0 0.0
          %409 = vmatpush1.msra.mxu0 0.0
          %410 = vmatprep.subr.mxu0 0.0
          %411 = vmatpush1.msra.mxu0 0.0
          %412 = vmatprep.subr.mxu0 0.0
          %413 = vmatpush1.msra.mxu0 0.0
          %414 = vmatprep.subr.mxu0 0.0
          %415 = vmatpush1.msra.mxu0 0.0
          %416 = vmatprep.subr.mxu0 0.0
          %417 = vmatpush1.msra.mxu0 %v354
          %418 = vmatprep.subr.mxu0 0.0
          %419 = vmatpush1.msra.mxu0 %v353
          %420 = vmatprep.subr.mxu0 0.0
          %421 = vmatpush1.msra.mxu0 %v352
          %422 = vmatprep.subr.mxu0 0.0
          %423 = vmatpush1.msra.mxu0 %v351
          %424 = vmatprep.subr.mxu0 0.0
          %425 = vmatpush2.msra.mxu0 0.0
          %426 = vmatprep.subr.mxu0 0.0
          %427 = vmatpush2.msra.mxu0 0.0
          %428 = vmatprep.subr.mxu0 0.0
          %429 = vmatpush2.msra.mxu0 0.0
          %430 = vmatprep.subr.mxu0 0.0
          %431 = vmatpush2.msra.mxu0 0.0
          %432 = vmatprep.subr.mxu0 0.0
          %433 = vmatpush2.msra.mxu0 0.0
          %434 = vmatprep.subr.mxu0 0.0
          %435 = vmatpush2.msra.mxu0 0.0
          %436 = vmatprep.subr.mxu0 0.0
          %437 = vmatpush2.msra.mxu0 0.0
          %438 = vmatprep.subr.mxu0 0.0
          %439 = vmatpush2.msra.mxu0 0.0
          %440 = vmatprep.subr.mxu0 0.0
          %441 = vmatpush2.msra.mxu0 0.0
          %442 = vmatprep.subr.mxu0 0.0
          %443 = vmatpush2.msra.mxu0 0.0
          %444 = vmatprep.subr.mxu0 0.0
          %445 = vmatpush2.msra.mxu0 0.0
          %446 = vmatprep.subr.mxu0 0.0
          %447 = vmatpush2.msra.mxu0 0.0
          %448 = vmatprep.subr.mxu0 0.0
          %449 = vmatpush2.msra.mxu0 0.0
          %450 = vmatprep.subr.mxu0 0.0
          %451 = vmatpush2.msra.mxu0 0.0
          %452 = vmatprep.subr.mxu0 0.0
          %453 = vmatpush2.msra.mxu0 0.0
          %454 = vmatprep.subr.mxu0 0.0
          %455 = vmatpush2.msra.mxu0 0.0
          %456 = vmatprep.mubr.f32.mxu0 0.0
          %457 = vmatmul.mubr.f32.gmra.mxu0 %v369
          %v458 = vpop.f32.mrf.mxu0
          %v459 = vadd.f32 %v367, %v458
          %v460 = vpop.f32.mrf.mxu0
          %461 = vmatprep.mubr.f32.mxu0 0.0
          %462 = vmatmul.mubr.f32.gmra.mxu0 %v372
          %v463 = vpop.f32.mrf.mxu0
          %v464 = vadd.f32 %v367, %v463
          %v465 = vpop.f32.mrf.mxu0
          %466 = vmatprep.mubr.f32.mxu0 0.0
          %467 = vmatmul.mubr.f32.gmra.mxu0 %v375
          %v468 = vpop.f32.mrf.mxu0
          %v469 = vadd.f32 %v367, %v468
          %v470 = vpop.f32.mrf.mxu0
          %471 = vmatprep.mubr.f32.mxu0 0.0
          %472 = vmatmul.mubr.f32.gmra.mxu0 %v378
          %v473 = vpop.f32.mrf.mxu0
          %v474 = vadd.f32 %v367, %v473
          %v475 = vpop.f32.mrf.mxu0
          %476 = vmatprep.mubr.f32.mxu0 0.0
          %477 = vmatmul.mubr.f32.gmra.mxu0 %v381
          %v478 = vpop.f32.mrf.mxu0
          %v479 = vadd.f32 %v367, %v478
          %v480 = vpop.f32.mrf.mxu0
          %481 = vmatprep.mubr.f32.mxu0 0.0
          %482 = vmatmul.mubr.f32.gmra.mxu0 %v384
          %v483 = vpop.f32.mrf.mxu0
          %v484 = vadd.f32 %v367, %v483
          %v485 = vpop.f32.mrf.mxu0
          %486 = vmatprep.mubr.f32.mxu0 0.0
          %487 = vmatmul.mubr.f32.gmra.mxu0 %v387
          %v488 = vpop.f32.mrf.mxu0
          %v489 = vadd.f32 %v367, %v488
          %v490 = vpop.f32.mrf.mxu0
          %491 = vmatprep.mubr.f32.mxu0 0.0
          %492 = vmatmul.mubr.f32.gmra.mxu0 %v390
          %v493 = vpop.f32.mrf.mxu0
          %v494 = vadd.f32 %v367, %v493
          %v495 = vpop.f32.mrf.mxu0
          %496 = vdwg.mxu0
          %497 = vst.msk [vmem:[#allocation3] sm:$0xff] %vm348, %v459
          %498 = vst.msk [vmem:[#allocation3 + $0x8] sm:$0xff] %vm348, %v464
          %499 = vst.msk [vmem:[#allocation3 + $0x10] sm:$0xff] %vm348, %v469
          %500 = vst.msk [vmem:[#allocation3 + $0x18] sm:$0xff] %vm348, %v474
          %501 = vst.msk [vmem:[#allocation3 + $0x20] sm:$0xff] %vm348, %v479
          %502 = vst.msk [vmem:[#allocation3 + $0x28] sm:$0xff] %vm348, %v484
          %503 = vst.msk [vmem:[#allocation3 + $0x30] sm:$0xff] %vm348, %v489
          %504 = vst.msk [vmem:[#allocation3 + $0x38] sm:$0xff] %vm348, %v494
        $region60: #{tpu_custom_call.1} parent=43 // pred_fallthru
          _
        %s505 = smul.u32 %s36, 8
        %s506 = sshra.s32 %s505, 7
        %s507 = sand.u32 %s505, 127
        %s508 = sadd.s32 %s506, %s37
        %s509 = smul.u32 %s508, 128
        %s510 = sshra.s32 %s505, 7
        %s511 = sand.u32 %s505, 127
        %s512 = sadd.s32 %s509, %s511
        %s513 = sld [smem:[#allocation5 + %s512]]
        %s514 = scalar_lea.vmem %s3, %s513
        %v515 = vld [vmem:[%s514] sm:$0x1]
        %s516 = sadd.s32 %s505, 1
        %s517 = sshra.s32 %s516, 7
        %s518 = sand.u32 %s516, 127
        %s519 = sadd.s32 %s517, %s37
        %s520 = smul.u32 %s519, 128
        %s521 = sshra.s32 %s516, 7
        %s522 = sand.u32 %s516, 127
        %s523 = sadd.s32 %s520, %s522
        %s524 = sld [smem:[#allocation5 + %s523]]
        %s525 = scalar_lea.vmem %s3, %s524
        %v526 = vld [vmem:[%s525] sm:$0x1]
        %s527 = sadd.s32 %s505, 2
        %s528 = sshra.s32 %s527, 7
        %s529 = sand.u32 %s527, 127
        %s530 = sadd.s32 %s528, %s37
        %s531 = smul.u32 %s530, 128
        %s532 = sshra.s32 %s527, 7
        %s533 = sand.u32 %s527, 127
        %s534 = sadd.s32 %s531, %s533
        %s535 = sld [smem:[#allocation5 + %s534]]
        %s536 = scalar_lea.vmem %s3, %s535
        %v537 = vld [vmem:[%s536] sm:$0x1]
        %s538 = sadd.s32 %s505, 3
        %s539 = sshra.s32 %s538, 7
        %s540 = sand.u32 %s538, 127
        %s541 = sadd.s32 %s539, %s37
        %s542 = smul.u32 %s541, 128
        %s543 = sshra.s32 %s538, 7
        %s544 = sand.u32 %s538, 127
        %s545 = sadd.s32 %s542, %s544
        %s546 = sld [smem:[#allocation5 + %s545]]
        %s547 = scalar_lea.vmem %s3, %s546
        %v548 = vld [vmem:[%s547] sm:$0x1]
        %s549 = sadd.s32 %s505, 4
        %s550 = sshra.s32 %s549, 7
        %s551 = sand.u32 %s549, 127
        %s552 = sadd.s32 %s550, %s37
        %s553 = smul.u32 %s552, 128
        %s554 = sshra.s32 %s549, 7
        %s555 = sand.u32 %s549, 127
        %s556 = sadd.s32 %s553, %s555
        %s557 = sld [smem:[#allocation5 + %s556]]
        %s558 = scalar_lea.vmem %s3, %s557
        %v559 = vld [vmem:[%s558] sm:$0x1]
        %s560 = sadd.s32 %s505, 5
        %s561 = sshra.s32 %s560, 7
        %s562 = sand.u32 %s560, 127
        %s563 = sadd.s32 %s561, %s37
        %s564 = smul.u32 %s563, 128
        %s565 = sshra.s32 %s560, 7
        %s566 = sand.u32 %s560, 127
        %s567 = sadd.s32 %s564, %s566
        %s568 = sld [smem:[#allocation5 + %s567]]
        %s569 = scalar_lea.vmem %s3, %s568
        %v570 = vld [vmem:[%s569] sm:$0x1]
        %s571 = sadd.s32 %s505, 6
        %s572 = sshra.s32 %s571, 7
        %s573 = sand.u32 %s571, 127
        %s574 = sadd.s32 %s572, %s37
        %s575 = smul.u32 %s574, 128
        %s576 = sshra.s32 %s571, 7
        %s577 = sand.u32 %s571, 127
        %s578 = sadd.s32 %s575, %s577
        %s579 = sld [smem:[#allocation5 + %s578]]
        %s580 = scalar_lea.vmem %s3, %s579
        %v581 = vld [vmem:[%s580] sm:$0x1]
        %s582 = sadd.s32 %s505, 7
        %s583 = sshra.s32 %s582, 7
        %s584 = sand.u32 %s582, 127
        %s585 = sadd.s32 %s583, %s37
        %s586 = smul.u32 %s585, 128
        %s587 = sshra.s32 %s582, 7
        %s588 = sand.u32 %s582, 127
        %s589 = sadd.s32 %s586, %s588
        %s590 = sld [smem:[#allocation5 + %s589]]
        %s591 = scalar_lea.vmem %s3, %s590
        %v592 = vld [vmem:[%s591] sm:$0x1]
        %v594 = vrot.slane %v526, 7
        %v597 = vrot.slane %v537, 6
        %v600 = vrot.slane %v548, 5
        %v603 = vrot.slane %v559, 4
        %v606 = vrot.slane %v570, 3
        %v609 = vrot.slane %v581, 2
        %v612 = vrot.slane %v592, 1
        %vm614 = vcmask 1040384
        %v615 = vsel %vm614, %v515, %v594
        %vm616 = vcmask 1041408
        %v617 = vsel %vm616, %v615, %v597
        %vm618 = vcmask 1042432
        %v619 = vsel %vm618, %v617, %v600
        %vm620 = vcmask 1043456
        %v621 = vsel %vm620, %v619, %v603
        %vm622 = vcmask 1044480
        %v623 = vsel %vm622, %v621, %v606
        %vm624 = vcmask 1045504
        %v625 = vsel %vm624, %v623, %v609
        %vm626 = vcmask 1046528
        %v627 = vsel %vm626, %v625, %v612
        %v628 = vld [vmem:[%s5] sm:$0xff]
        %v629 = vld [vmem:[%s5 + $0x8] sm:$0xff]
        %v630 = vld [vmem:[%s5 + $0x10] sm:$0xff]
        %v631 = vld [vmem:[%s5 + $0x18] sm:$0xff]
        %v632 = vld [vmem:[%s5 + $0x41] sm:$0x1]
        %s633 = scalar_lea.vmem [#allocation2], 8
        %v634 = vld [vmem:[%s633] sm:$0xff]
        %vm635 = vcmask 261120
        %v637 = vsel %vm635, %v634, 0
        %639 = vmatprep.subr.mxu0 0.0
        %640 = vmatpush1.msra.mxu0 0.0
        %641 = vmatprep.subr.mxu0 0.0
        %642 = vmatpush1.msra.mxu0 0.0
        %643 = vmatprep.subr.mxu0 0.0
        %644 = vmatpush1.msra.mxu0 0.0
        %645 = vmatprep.subr.mxu0 0.0
        %646 = vmatpush1.msra.mxu0 0.0
        %647 = vmatprep.subr.mxu0 0.0
        %648 = vmatpush1.msra.mxu0 0.0
        %649 = vmatprep.subr.mxu0 0.0
        %650 = vmatpush1.msra.mxu0 0.0
        %651 = vmatprep.subr.mxu0 0.0
        %652 = vmatpush1.msra.mxu0 0.0
        %653 = vmatprep.subr.mxu0 0.0
        %654 = vmatpush1.msra.mxu0 0.0
        %655 = vmatprep.subr.mxu0 0.0
        %656 = vmatpush1.msra.mxu0 0.0
        %657 = vmatprep.subr.mxu0 0.0
        %658 = vmatpush1.msra.mxu0 0.0
        %659 = vmatprep.subr.mxu0 0.0
        %660 = vmatpush1.msra.mxu0 0.0
        %661 = vmatprep.subr.mxu0 0.0
        %662 = vmatpush1.msra.mxu0 0.0
        %663 = vmatprep.subr.mxu0 0.0
        %664 = vmatpush1.msra.mxu0 %v631
        %665 = vmatprep.subr.mxu0 0.0
        %666 = vmatpush1.msra.mxu0 %v630
        %667 = vmatprep.subr.mxu0 0.0
        %668 = vmatpush1.msra.mxu0 %v629
        %669 = vmatprep.subr.mxu0 0.0
        %670 = vmatpush1.msra.mxu0 %v628
        %671 = vmatprep.subr.mxu0 0.0
        %672 = vmatpush2.msra.mxu0 0.0
        %673 = vmatprep.subr.mxu0 0.0
        %674 = vmatpush2.msra.mxu0 0.0
        %675 = vmatprep.subr.mxu0 0.0
        %676 = vmatpush2.msra.mxu0 0.0
        %677 = vmatprep.subr.mxu0 0.0
        %678 = vmatpush2.msra.mxu0 0.0
        %679 = vmatprep.subr.mxu0 0.0
        %680 = vmatpush2.msra.mxu0 0.0
        %681 = vmatprep.subr.mxu0 0.0
        %682 = vmatpush2.msra.mxu0 0.0
        %683 = vmatprep.subr.mxu0 0.0
        %684 = vmatpush2.msra.mxu0 0.0
        %685 = vmatprep.subr.mxu0 0.0
        %686 = vmatpush2.msra.mxu0 0.0
        %687 = vmatprep.subr.mxu0 0.0
        %688 = vmatpush2.msra.mxu0 0.0
        %689 = vmatprep.subr.mxu0 0.0
        %690 = vmatpush2.msra.mxu0 0.0
        %691 = vmatprep.subr.mxu0 0.0
        %692 = vmatpush2.msra.mxu0 0.0
        %693 = vmatprep.subr.mxu0 0.0
        %694 = vmatpush2.msra.mxu0 0.0
        %695 = vmatprep.subr.mxu0 0.0
        %696 = vmatpush2.msra.mxu0 0.0
        %697 = vmatprep.subr.mxu0 0.0
        %698 = vmatpush2.msra.mxu0 0.0
        %699 = vmatprep.subr.mxu0 0.0
        %700 = vmatpush2.msra.mxu0 0.0
        %701 = vmatprep.subr.mxu0 0.0
        %702 = vmatpush2.msra.mxu0 0.0
        %703 = vmatprep.mubr.f32.mxu0 0.0
        %704 = vmatmul.mubr.f32.gmra.mxu0 %v637
        %v705 = vpop.f32.mrf.mxu0
        %v706 = vadd.f32 0.0, %v705
        %v707 = vpop.f32.mrf.mxu0
        %708 = vdwg.mxu0
        %v710 = vcombine.high %v706, %v706
        %v712 = vunpack.c.l.s4 1966171168
        %v713 = vunpack.c.0.s8 %v712
        %v714 = vlaneseq
        %v715 = vshrl.u32 %v714, 7
        %v716 = vsub.s32 %v713, %v715
        %v717 = vrot.slane %v706, %v716
        %v719 = vunpack.c.l.s4 1966171168
        %v720 = vunpack.c.0.s8 %v719
        %v721 = vlaneseq
        %v722 = vshrl.u32 %v721, 7
        %v723 = vsub.s32 %v720, %v722
        %v724 = vrot.slane %v710, %v723
        %v725 = vcombine.high %v717, %v717
        %v726 = vcombine.high %v724, %v724
        %v728 = vunpack.c.l.s4 1966171168
        %v729 = vunpack.c.0.s8 %v728
        %v730 = vlaneseq
        %v731 = vshrl.u32 %v730, 7
        %v732 = vsub.s32 %v729, %v731
        %v733 = vrot.slane %v717, %v732
        %v735 = vunpack.c.l.s4 1966171168
        %v736 = vunpack.c.0.s8 %v735
        %v737 = vlaneseq
        %v738 = vshrl.u32 %v737, 7
        %v739 = vsub.s32 %v736, %v738
        %v740 = vrot.slane %v724, %v739
        %v742 = vunpack.c.l.s4 1966171168
        %v743 = vunpack.c.0.s8 %v742
        %v744 = vlaneseq
        %v745 = vshrl.u32 %v744, 7
        %v746 = vsub.s32 %v743, %v745
        %v747 = vrot.slane %v725, %v746
        %v749 = vunpack.c.l.s4 1966171168
        %v750 = vunpack.c.0.s8 %v749
        %v751 = vlaneseq
        %v752 = vshrl.u32 %v751, 7
        %v753 = vsub.s32 %v750, %v752
        %v754 = vrot.slane %v726, %v753
        %v755 = vcombine.high %v733, %v733
        %v756 = vcombine.high %v740, %v740
        %v757 = vcombine.high %v747, %v747
        %v758 = vcombine.high %v754, %v754
        %v759 = vld [vmem:[#allocation3] sm:$0xff]
        %v760 = vld [vmem:[#allocation3 + $0x8] sm:$0xff]
        %v761 = vld [vmem:[#allocation3 + $0x10] sm:$0xff]
        %v762 = vld [vmem:[#allocation3 + $0x18] sm:$0xff]
        %v763 = vld [vmem:[#allocation3 + $0x20] sm:$0xff]
        %v764 = vld [vmem:[#allocation3 + $0x28] sm:$0xff]
        %v765 = vld [vmem:[#allocation3 + $0x30] sm:$0xff]
        %v766 = vld [vmem:[#allocation3 + $0x38] sm:$0xff]
        %v767 = vlaneseq
        %v768 = vshrl.u32 %v767, 7
        %v769 = vsub.s32 0, %v768
        %v770 = vrot.slane %v733, %v769
        %v771 = vlaneseq
        %v772 = vshrl.u32 %v771, 7
        %v773 = vsub.s32 0, %v772
        %v774 = vrot.slane %v747, %v773
        %v775 = vlaneseq
        %v776 = vshrl.u32 %v775, 7
        %v777 = vsub.s32 0, %v776
        %v778 = vrot.slane %v755, %v777
        %v779 = vlaneseq
        %v780 = vshrl.u32 %v779, 7
        %v781 = vsub.s32 0, %v780
        %v782 = vrot.slane %v757, %v781
        %v783 = vlaneseq
        %v784 = vshrl.u32 %v783, 7
        %v785 = vsub.s32 0, %v784
        %v786 = vrot.slane %v740, %v785
        %v787 = vlaneseq
        %v788 = vshrl.u32 %v787, 7
        %v789 = vsub.s32 0, %v788
        %v790 = vrot.slane %v754, %v789
        %v791 = vlaneseq
        %v792 = vshrl.u32 %v791, 7
        %v793 = vsub.s32 0, %v792
        %v794 = vrot.slane %v756, %v793
        %v795 = vlaneseq
        %v796 = vshrl.u32 %v795, 7
        %v797 = vsub.s32 0, %v796
        %v798 = vrot.slane %v758, %v797
        %v807 = vadd.f32 %v770, %v759
        %v808 = vadd.f32 %v774, %v760
        %v809 = vadd.f32 %v778, %v761
        %v810 = vadd.f32 %v782, %v762
        %v811 = vadd.f32 %v786, %v763
        %v812 = vadd.f32 %v790, %v764
        %v813 = vadd.f32 %v794, %v765
        %v814 = vadd.f32 %v798, %v766
        %v815 = vtanh.pop %v807
        %v816 = vtanh.pop %v808
        %v817 = vtanh.pop %v809
        %v818 = vtanh.pop %v810
        %v819 = vtanh.pop %v811
        %v820 = vtanh.pop %v812
        %v821 = vtanh.pop %v813
        %v822 = vtanh.pop %v814
        %v823 = vlaneseq
        %v824 = vshrl.u32 %v823, 7
        %v825 = vsub.s32 0, %v824
        %v826 = vrot.slane %v632, %v825
        %v827 = vmul.f32 %v815, %v826
        %v828 = vmul.f32 %v816, %v826
        %v829 = vmul.f32 %v817, %v826
        %v830 = vmul.f32 %v818, %v826
        %v831 = vmul.f32 %v819, %v826
        %v832 = vmul.f32 %v820, %v826
        %v833 = vmul.f32 %v821, %v826
        %v834 = vmul.f32 %v822, %v826
        %v835 = vsel %vm635, %v827, 0.0
        %836 = vadd.xlane.f32.xlu0 %v835
        %v837 = vpop.xlane.xlu0 %836
        %v838 = vsel %vm635, %v828, 0.0
        %839 = vadd.xlane.f32.xlu0 %v838
        %v840 = vpop.xlane.xlu0 %839
        %v841 = vsel %vm635, %v829, 0.0
        %842 = vadd.xlane.f32.xlu0 %v841
        %v843 = vpop.xlane.xlu0 %842
        %v844 = vsel %vm635, %v830, 0.0
        %845 = vadd.xlane.f32.xlu0 %v844
        %v846 = vpop.xlane.xlu0 %845
        %v847 = vsel %vm635, %v831, 0.0
        %848 = vadd.xlane.f32.xlu0 %v847
        %v849 = vpop.xlane.xlu0 %848
        %v850 = vsel %vm635, %v832, 0.0
        %851 = vadd.xlane.f32.xlu0 %v850
        %v852 = vpop.xlane.xlu0 %851
        %v853 = vsel %vm635, %v833, 0.0
        %854 = vadd.xlane.f32.xlu0 %v853
        %v855 = vpop.xlane.xlu0 %854
        %v856 = vsel %vm635, %v834, 0.0
        %857 = vadd.xlane.f32.xlu0 %v856
        %v858 = vpop.xlane.xlu0 %857
        %v867 = vlaneseq
        %v868 = vand.u32 %v867, 127
        %v869 = vlaneseq
        %v870 = vshrl.u32 %v869, 7
        %v871 = vsub.s32 %v868, %v870
        %v872 = vrot.slane %v837, %v871
        %v873 = vlaneseq
        %v874 = vshrl.u32 %v873, 7
        %v875 = vsub.s32 %v868, %v874
        %v876 = vrot.slane %v840, %v875
        %v877 = vlaneseq
        %v878 = vshrl.u32 %v877, 7
        %v879 = vsub.s32 %v868, %v878
        %v880 = vrot.slane %v843, %v879
        %v881 = vlaneseq
        %v882 = vshrl.u32 %v881, 7
        %v883 = vsub.s32 %v868, %v882
        %v884 = vrot.slane %v846, %v883
        %v885 = vlaneseq
        %v886 = vshrl.u32 %v885, 7
        %v887 = vsub.s32 %v868, %v886
        %v888 = vrot.slane %v849, %v887
        %v889 = vlaneseq
        %v890 = vshrl.u32 %v889, 7
        %v891 = vsub.s32 %v868, %v890
        %v892 = vrot.slane %v852, %v891
        %v893 = vlaneseq
        %v894 = vshrl.u32 %v893, 7
        %v895 = vsub.s32 %v868, %v894
        %v896 = vrot.slane %v855, %v895
        %v897 = vlaneseq
        %v898 = vshrl.u32 %v897, 7
        %v899 = vsub.s32 %v868, %v898
        %v900 = vrot.slane %v858, %v899
        %vm901 = vcmask 1041409
        %v902 = vsel %vm901, %v876, %v872
        %vm903 = vcmask 1042434
        %v904 = vsel %vm903, %v880, %v902
        %vm905 = vcmask 1043459
        %v906 = vsel %vm905, %v884, %v904
        %vm907 = vcmask 1044484
        %v908 = vsel %vm907, %v888, %v906
        %vm909 = vcmask 1045509
        %v910 = vsel %vm909, %v892, %v908
        %vm911 = vcmask 1046534
        %v912 = vsel %vm911, %v896, %v910
        %vm913 = vcmask 1047559
        %v914 = vsel %vm913, %v900, %v912
        %vm916 = vcmask 64512
        %v917 = vsel %vm916, %v914, -inf
        %918 = vmax.xlane.f32.xlu0 %v917
        %v919 = vpop.xlane.xlu0 %918
        %v921 = vlaneseq
        %v922 = vshrl.u32 %v921, 7
        %v923 = vsub.s32 0, %v922
        %v924 = vrot.slane %v919, %v923
        %v925 = vlaneseq
        %v926 = vshrl.u32 %v925, 7
        %v927 = vsub.s32 1, %v926
        %v928 = vrot.slane %v919, %v927
        %v929 = vlaneseq
        %v930 = vshrl.u32 %v929, 7
        %v931 = vsub.s32 2, %v930
        %v932 = vrot.slane %v919, %v931
        %v933 = vlaneseq
        %v934 = vshrl.u32 %v933, 7
        %v935 = vsub.s32 3, %v934
        %v936 = vrot.slane %v919, %v935
        %v937 = vlaneseq
        %v938 = vshrl.u32 %v937, 7
        %v939 = vsub.s32 4, %v938
        %v940 = vrot.slane %v919, %v939
        %v941 = vlaneseq
        %v942 = vshrl.u32 %v941, 7
        %v943 = vsub.s32 5, %v942
        %v944 = vrot.slane %v919, %v943
        %v945 = vlaneseq
        %v946 = vshrl.u32 %v945, 7
        %v947 = vsub.s32 6, %v946
        %v948 = vrot.slane %v919, %v947
        %v949 = vlaneseq
        %v950 = vshrl.u32 %v949, 7
        %v951 = vsub.s32 7, %v950
        %v952 = vrot.slane %v919, %v951
        %v961 = vsub.f32 %v837, %v924
        %v962 = vsub.f32 %v840, %v928
        %v963 = vsub.f32 %v843, %v932
        %v964 = vsub.f32 %v846, %v936
        %v965 = vsub.f32 %v849, %v940
        %v966 = vsub.f32 %v852, %v944
        %v967 = vsub.f32 %v855, %v948
        %v968 = vsub.f32 %v858, %v952
        %v969 = vmul.f32 %v961, 1.442695
        %v970 = vpow.pop %v969
        %v971 = vmul.f32 %v962, 1.442695
        %v972 = vpow.pop %v971
        %v973 = vmul.f32 %v963, 1.442695
        %v974 = vpow.pop %v973
        %v975 = vmul.f32 %v964, 1.442695
        %v976 = vpow.pop %v975
        %v977 = vmul.f32 %v965, 1.442695
        %v978 = vpow.pop %v977
        %v979 = vmul.f32 %v966, 1.442695
        %v980 = vpow.pop %v979
        %v981 = vmul.f32 %v967, 1.442695
        %v982 = vpow.pop %v981
        %v983 = vmul.f32 %v968, 1.442695
        %v984 = vpow.pop %v983
        %993 = vset.pattern.permute.xlu0 0
        %994 = vperm.xlu0 %993, %v970
        %v995 = vpop.permute.xlu0 %994
        %996 = vset.pattern.permute.xlu0 0
        %997 = vperm.xlu0 %996, %v972
        %v998 = vpop.permute.xlu0 %997
        %999 = vset.pattern.permute.xlu0 0
        %1000 = vperm.xlu0 %999, %v974
        %v1001 = vpop.permute.xlu0 %1000
        %1002 = vset.pattern.permute.xlu0 0
        %1003 = vperm.xlu0 %1002, %v976
        %v1004 = vpop.permute.xlu0 %1003
        %1005 = vset.pattern.permute.xlu0 0
        %1006 = vperm.xlu0 %1005, %v978
        %v1007 = vpop.permute.xlu0 %1006
        %1008 = vset.pattern.permute.xlu0 0
        %1009 = vperm.xlu0 %1008, %v980
        %v1010 = vpop.permute.xlu0 %1009
        %1011 = vset.pattern.permute.xlu0 0
        %1012 = vperm.xlu0 %1011, %v982
        %v1013 = vpop.permute.xlu0 %1012
        %1014 = vset.pattern.permute.xlu0 0
        %1015 = vperm.xlu0 %1014, %v984
        %v1016 = vpop.permute.xlu0 %1015
        %v1017 = vlaneseq
        %v1018 = vshrl.u32 %v1017, 7
        %v1019 = vsub.s32 %v868, %v1018
        %v1020 = vrot.slane %v995, %v1019
        %v1021 = vlaneseq
        %v1022 = vshrl.u32 %v1021, 7
        %v1023 = vsub.s32 %v868, %v1022
        %v1024 = vrot.slane %v998, %v1023
        %v1025 = vlaneseq
        %v1026 = vshrl.u32 %v1025, 7
        %v1027 = vsub.s32 %v868, %v1026
        %v1028 = vrot.slane %v1001, %v1027
        %v1029 = vlaneseq
        %v1030 = vshrl.u32 %v1029, 7
        %v1031 = vsub.s32 %v868, %v1030
        %v1032 = vrot.slane %v1004, %v1031
        %v1033 = vlaneseq
        %v1034 = vshrl.u32 %v1033, 7
        %v1035 = vsub.s32 %v868, %v1034
        %v1036 = vrot.slane %v1007, %v1035
        %v1037 = vlaneseq
        %v1038 = vshrl.u32 %v1037, 7
        %v1039 = vsub.s32 %v868, %v1038
        %v1040 = vrot.slane %v1010, %v1039
        %v1041 = vlaneseq
        %v1042 = vshrl.u32 %v1041, 7
        %v1043 = vsub.s32 %v868, %v1042
        %v1044 = vrot.slane %v1013, %v1043
        %v1045 = vlaneseq
        %v1046 = vshrl.u32 %v1045, 7
        %v1047 = vsub.s32 %v868, %v1046
        %v1048 = vrot.slane %v1016, %v1047
        %v1049 = vsel %vm901, %v1024, %v1020
        %v1050 = vsel %vm903, %v1028, %v1049
        %v1051 = vsel %vm905, %v1032, %v1050
        %v1052 = vsel %vm907, %v1036, %v1051
        %v1053 = vsel %vm909, %v1040, %v1052
        %v1054 = vsel %vm911, %v1044, %v1053
        %v1055 = vsel %vm913, %v1048, %v1054
        %v1057 = vsel %vm916, %v1055, 0.0
        %1058 = vadd.xlane.f32.xlu0 %v1057
        %v1059 = vpop.xlane.xlu0 %1058
        %v1061 = vlaneseq
        %v1062 = vshrl.u32 %v1061, 7
        %v1063 = vsub.s32 0, %v1062
        %v1064 = vrot.slane %v1059, %v1063
        %v1065 = vlaneseq
        %v1066 = vshrl.u32 %v1065, 7
        %v1067 = vsub.s32 1, %v1066
        %v1068 = vrot.slane %v1059, %v1067
        %v1069 = vlaneseq
        %v1070 = vshrl.u32 %v1069, 7
        %v1071 = vsub.s32 2, %v1070
        %v1072 = vrot.slane %v1059, %v1071
        %v1073 = vlaneseq
        %v1074 = vshrl.u32 %v1073, 7
        %v1075 = vsub.s32 3, %v1074
        %v1076 = vrot.slane %v1059, %v1075
        %v1077 = vlaneseq
        %v1078 = vshrl.u32 %v1077, 7
        %v1079 = vsub.s32 4, %v1078
        %v1080 = vrot.slane %v1059, %v1079
        %v1081 = vlaneseq
        %v1082 = vshrl.u32 %v1081, 7
        %v1083 = vsub.s32 5, %v1082
        %v1084 = vrot.slane %v1059, %v1083
        %v1085 = vlaneseq
        %v1086 = vshrl.u32 %v1085, 7
        %v1087 = vsub.s32 6, %v1086
        %v1088 = vrot.slane %v1059, %v1087
        %v1089 = vlaneseq
        %v1090 = vshrl.u32 %v1089, 7
        %v1091 = vsub.s32 7, %v1090
        %v1092 = vrot.slane %v1059, %v1091
        %v1101 = vrcp.pop %v1064
        %v1102 = vmul.f32 %v970, %v1101
        %v1103 = vrcp.pop %v1068
        %v1104 = vmul.f32 %v972, %v1103
        %v1105 = vrcp.pop %v1072
        %v1106 = vmul.f32 %v974, %v1105
        %v1107 = vrcp.pop %v1076
        %v1108 = vmul.f32 %v976, %v1107
        %v1109 = vrcp.pop %v1080
        %v1110 = vmul.f32 %v978, %v1109
        %v1111 = vrcp.pop %v1084
        %v1112 = vmul.f32 %v980, %v1111
        %v1113 = vrcp.pop %v1088
        %v1114 = vmul.f32 %v982, %v1113
        %v1115 = vrcp.pop %v1092
        %v1116 = vmul.f32 %v984, %v1115
        %v1117 = vld [vmem:[#allocation9] sm:$0xff]
        %v1118 = vld [vmem:[#allocation9 + $0x8] sm:$0xff]
        %v1119 = vld [vmem:[#allocation9 + $0x10] sm:$0xff]
        %v1120 = vld [vmem:[#allocation9 + $0x18] sm:$0xff]
        %v1121 = vld [vmem:[#allocation9 + $0x20] sm:$0xff]
        %v1122 = vld [vmem:[#allocation9 + $0x28] sm:$0xff]
        %v1123 = vld [vmem:[#allocation9 + $0x30] sm:$0xff]
        %v1124 = vld [vmem:[#allocation9 + $0x38] sm:$0xff]
        %1126 = vset.pattern.permute.xlu0 0
        %1127 = vperm.xlu0 %1126, %v1102
        %v1128 = vpop.permute.xlu0 %1127
        %v1129 = vlaneseq
        %v1130 = vshrl.u32 %v1129, 7
        %v1131 = vsub.s32 %v868, %v1130
        %v1132 = vrot.slane %v1128, %v1131
        %v1133 = vsel %vm916, %v1132, 0
        %1135 = vmatprep.subr.mxu0 0.0
        %1136 = vmatpush1.msra.mxu0 0.0
        %1137 = vmatprep.subr.mxu0 0.0
        %1138 = vmatpush1.msra.mxu0 0.0
        %1139 = vmatprep.subr.mxu0 0.0
        %1140 = vmatpush1.msra.mxu0 0.0
        %1141 = vmatprep.subr.mxu0 0.0
        %1142 = vmatpush1.msra.mxu0 0.0
        %1143 = vmatprep.subr.mxu0 0.0
        %1144 = vmatpush1.msra.mxu0 0.0
        %1145 = vmatprep.subr.mxu0 0.0
        %1146 = vmatpush1.msra.mxu0 0.0
        %1147 = vmatprep.subr.mxu0 0.0
        %1148 = vmatpush1.msra.mxu0 0.0
        %1149 = vmatprep.subr.mxu0 0.0
        %1150 = vmatpush1.msra.mxu0 0.0
        %1151 = vmatprep.subr.mxu0 0.0
        %1152 = vmatpush1.msra.mxu0 0.0
        %1153 = vmatprep.subr.mxu0 0.0
        %1154 = vmatpush1.msra.mxu0 0.0
        %1155 = vmatprep.subr.mxu0 0.0
        %1156 = vmatpush1.msra.mxu0 0.0
        %1157 = vmatprep.subr.mxu0 0.0
        %1158 = vmatpush1.msra.mxu0 0.0
        %1159 = vmatprep.subr.mxu0 0.0
        %1160 = vmatpush1.msra.mxu0 0.0
        %1161 = vmatprep.subr.mxu0 0.0
        %1162 = vmatpush1.msra.mxu0 0.0
        %1163 = vmatprep.subr.mxu0 0.0
        %1164 = vmatpush1.msra.mxu0 0.0
        %1165 = vmatprep.subr.mxu0 0.0
        %1166 = vmatpush1.msra.mxu0 %v1117
        %1167 = vmatprep.subr.mxu0 0.0
        %1168 = vmatpush2.msra.mxu0 0.0
        %1169 = vmatprep.subr.mxu0 0.0
        %1170 = vmatpush2.msra.mxu0 0.0
        %1171 = vmatprep.subr.mxu0 0.0
        %1172 = vmatpush2.msra.mxu0 0.0
        %1173 = vmatprep.subr.mxu0 0.0
        %1174 = vmatpush2.msra.mxu0 0.0
        %1175 = vmatprep.subr.mxu0 0.0
        %1176 = vmatpush2.msra.mxu0 0.0
        %1177 = vmatprep.subr.mxu0 0.0
        %1178 = vmatpush2.msra.mxu0 0.0
        %1179 = vmatprep.subr.mxu0 0.0
        %1180 = vmatpush2.msra.mxu0 0.0
        %1181 = vmatprep.subr.mxu0 0.0
        %1182 = vmatpush2.msra.mxu0 0.0
        %1183 = vmatprep.subr.mxu0 0.0
        %1184 = vmatpush2.msra.mxu0 0.0
        %1185 = vmatprep.subr.mxu0 0.0
        %1186 = vmatpush2.msra.mxu0 0.0
        %1187 = vmatprep.subr.mxu0 0.0
        %1188 = vmatpush2.msra.mxu0 0.0
        %1189 = vmatprep.subr.mxu0 0.0
        %1190 = vmatpush2.msra.mxu0 0.0
        %1191 = vmatprep.subr.mxu0 0.0
        %1192 = vmatpush2.msra.mxu0 0.0
        %1193 = vmatprep.subr.mxu0 0.0
        %1194 = vmatpush2.msra.mxu0 0.0
        %1195 = vmatprep.subr.mxu0 0.0
        %1196 = vmatpush2.msra.mxu0 0.0
        %1197 = vmatprep.subr.mxu0 0.0
        %1198 = vmatpush2.msra.mxu0 0.0
        %1199 = vmatprep.mubr.f32.mxu0 0.0
        %1200 = vmatmul.mubr.f32.gmra.mxu0 %v1133
        %v1201 = vpop.f32.mrf.mxu0
        %v1202 = vadd.f32 0.0, %v1201
        %v1203 = vpop.f32.mrf.mxu0
        %1204 = vdwg.mxu0
        %1206 = vset.pattern.permute.xlu0 0
        %1207 = vperm.xlu0 %1206, %v1104
        %v1208 = vpop.permute.xlu0 %1207
        %v1209 = vlaneseq
        %v1210 = vshrl.u32 %v1209, 7
        %v1211 = vsub.s32 %v868, %v1210
        %v1212 = vrot.slane %v1208, %v1211
        %v1213 = vsel %vm916, %v1212, 0
        %1215 = vmatprep.subr.mxu0 0.0
        %1216 = vmatpush1.msra.mxu0 0.0
        %1217 = vmatprep.subr.mxu0 0.0
        %1218 = vmatpush1.msra.mxu0 0.0
        %1219 = vmatprep.subr.mxu0 0.0
        %1220 = vmatpush1.msra.mxu0 0.0
        %1221 = vmatprep.subr.mxu0 0.0
        %1222 = vmatpush1.msra.mxu0 0.0
        %1223 = vmatprep.subr.mxu0 0.0
        %1224 = vmatpush1.msra.mxu0 0.0
        %1225 = vmatprep.subr.mxu0 0.0
        %1226 = vmatpush1.msra.mxu0 0.0
        %1227 = vmatprep.subr.mxu0 0.0
        %1228 = vmatpush1.msra.mxu0 0.0
        %1229 = vmatprep.subr.mxu0 0.0
        %1230 = vmatpush1.msra.mxu0 0.0
        %1231 = vmatprep.subr.mxu0 0.0
        %1232 = vmatpush1.msra.mxu0 0.0
        %1233 = vmatprep.subr.mxu0 0.0
        %1234 = vmatpush1.msra.mxu0 0.0
        %1235 = vmatprep.subr.mxu0 0.0
        %1236 = vmatpush1.msra.mxu0 0.0
        %1237 = vmatprep.subr.mxu0 0.0
        %1238 = vmatpush1.msra.mxu0 0.0
        %1239 = vmatprep.subr.mxu0 0.0
        %1240 = vmatpush1.msra.mxu0 0.0
        %1241 = vmatprep.subr.mxu0 0.0
        %1242 = vmatpush1.msra.mxu0 0.0
        %1243 = vmatprep.subr.mxu0 0.0
        %1244 = vmatpush1.msra.mxu0 0.0
        %1245 = vmatprep.subr.mxu0 0.0
        %1246 = vmatpush1.msra.mxu0 %v1118
        %1247 = vmatprep.subr.mxu0 0.0
        %1248 = vmatpush2.msra.mxu0 0.0
        %1249 = vmatprep.subr.mxu0 0.0
        %1250 = vmatpush2.msra.mxu0 0.0
        %1251 = vmatprep.subr.mxu0 0.0
        %1252 = vmatpush2.msra.mxu0 0.0
        %1253 = vmatprep.subr.mxu0 0.0
        %1254 = vmatpush2.msra.mxu0 0.0
        %1255 = vmatprep.subr.mxu0 0.0
        %1256 = vmatpush2.msra.mxu0 0.0
        %1257 = vmatprep.subr.mxu0 0.0
        %1258 = vmatpush2.msra.mxu0 0.0
        %1259 = vmatprep.subr.mxu0 0.0
        %1260 = vmatpush2.msra.mxu0 0.0
        %1261 = vmatprep.subr.mxu0 0.0
        %1262 = vmatpush2.msra.mxu0 0.0
        %1263 = vmatprep.subr.mxu0 0.0
        %1264 = vmatpush2.msra.mxu0 0.0
        %1265 = vmatprep.subr.mxu0 0.0
        %1266 = vmatpush2.msra.mxu0 0.0
        %1267 = vmatprep.subr.mxu0 0.0
        %1268 = vmatpush2.msra.mxu0 0.0
        %1269 = vmatprep.subr.mxu0 0.0
        %1270 = vmatpush2.msra.mxu0 0.0
        %1271 = vmatprep.subr.mxu0 0.0
        %1272 = vmatpush2.msra.mxu0 0.0
        %1273 = vmatprep.subr.mxu0 0.0
        %1274 = vmatpush2.msra.mxu0 0.0
        %1275 = vmatprep.subr.mxu0 0.0
        %1276 = vmatpush2.msra.mxu0 0.0
        %1277 = vmatprep.subr.mxu0 0.0
        %1278 = vmatpush2.msra.mxu0 0.0
        %1279 = vmatprep.mubr.f32.mxu0 0.0
        %1280 = vmatmul.mubr.f32.gmra.mxu0 %v1213
        %v1281 = vpop.f32.mrf.mxu0
        %v1282 = vadd.f32 0.0, %v1281
        %v1283 = vpop.f32.mrf.mxu0
        %1284 = vdwg.mxu0
        %1286 = vset.pattern.permute.xlu0 0
        %1287 = vperm.xlu0 %1286, %v1106
        %v1288 = vpop.permute.xlu0 %1287
        %v1289 = vlaneseq
        %v1290 = vshrl.u32 %v1289, 7
        %v1291 = vsub.s32 %v868, %v1290
        %v1292 = vrot.slane %v1288, %v1291
        %v1293 = vsel %vm916, %v1292, 0
        %1295 = vmatprep.subr.mxu0 0.0
        %1296 = vmatpush1.msra.mxu0 0.0
        %1297 = vmatprep.subr.mxu0 0.0
        %1298 = vmatpush1.msra.mxu0 0.0
        %1299 = vmatprep.subr.mxu0 0.0
        %1300 = vmatpush1.msra.mxu0 0.0
        %1301 = vmatprep.subr.mxu0 0.0
        %1302 = vmatpush1.msra.mxu0 0.0
        %1303 = vmatprep.subr.mxu0 0.0
        %1304 = vmatpush1.msra.mxu0 0.0
        %1305 = vmatprep.subr.mxu0 0.0
        %1306 = vmatpush1.msra.mxu0 0.0
        %1307 = vmatprep.subr.mxu0 0.0
        %1308 = vmatpush1.msra.mxu0 0.0
        %1309 = vmatprep.subr.mxu0 0.0
        %1310 = vmatpush1.msra.mxu0 0.0
        %1311 = vmatprep.subr.mxu0 0.0
        %1312 = vmatpush1.msra.mxu0 0.0
        %1313 = vmatprep.subr.mxu0 0.0
        %1314 = vmatpush1.msra.mxu0 0.0
        %1315 = vmatprep.subr.mxu0 0.0
        %1316 = vmatpush1.msra.mxu0 0.0
        %1317 = vmatprep.subr.mxu0 0.0
        %1318 = vmatpush1.msra.mxu0 0.0
        %1319 = vmatprep.subr.mxu0 0.0
        %1320 = vmatpush1.msra.mxu0 0.0
        %1321 = vmatprep.subr.mxu0 0.0
        %1322 = vmatpush1.msra.mxu0 0.0
        %1323 = vmatprep.subr.mxu0 0.0
        %1324 = vmatpush1.msra.mxu0 0.0
        %1325 = vmatprep.subr.mxu0 0.0
        %1326 = vmatpush1.msra.mxu0 %v1119
        %1327 = vmatprep.subr.mxu0 0.0
        %1328 = vmatpush2.msra.mxu0 0.0
        %1329 = vmatprep.subr.mxu0 0.0
        %1330 = vmatpush2.msra.mxu0 0.0
        %1331 = vmatprep.subr.mxu0 0.0
        %1332 = vmatpush2.msra.mxu0 0.0
        %1333 = vmatprep.subr.mxu0 0.0
        %1334 = vmatpush2.msra.mxu0 0.0
        %1335 = vmatprep.subr.mxu0 0.0
        %1336 = vmatpush2.msra.mxu0 0.0
        %1337 = vmatprep.subr.mxu0 0.0
        %1338 = vmatpush2.msra.mxu0 0.0
        %1339 = vmatprep.subr.mxu0 0.0
        %1340 = vmatpush2.msra.mxu0 0.0
        %1341 = vmatprep.subr.mxu0 0.0
        %1342 = vmatpush2.msra.mxu0 0.0
        %1343 = vmatprep.subr.mxu0 0.0
        %1344 = vmatpush2.msra.mxu0 0.0
        %1345 = vmatprep.subr.mxu0 0.0
        %1346 = vmatpush2.msra.mxu0 0.0
        %1347 = vmatprep.subr.mxu0 0.0
        %1348 = vmatpush2.msra.mxu0 0.0
        %1349 = vmatprep.subr.mxu0 0.0
        %1350 = vmatpush2.msra.mxu0 0.0
        %1351 = vmatprep.subr.mxu0 0.0
        %1352 = vmatpush2.msra.mxu0 0.0
        %1353 = vmatprep.subr.mxu0 0.0
        %1354 = vmatpush2.msra.mxu0 0.0
        %1355 = vmatprep.subr.mxu0 0.0
        %1356 = vmatpush2.msra.mxu0 0.0
        %1357 = vmatprep.subr.mxu0 0.0
        %1358 = vmatpush2.msra.mxu0 0.0
        %1359 = vmatprep.mubr.f32.mxu0 0.0
        %1360 = vmatmul.mubr.f32.gmra.mxu0 %v1293
        %v1361 = vpop.f32.mrf.mxu0
        %v1362 = vadd.f32 0.0, %v1361
        %v1363 = vpop.f32.mrf.mxu0
        %1364 = vdwg.mxu0
        %1366 = vset.pattern.permute.xlu0 0
        %1367 = vperm.xlu0 %1366, %v1108
        %v1368 = vpop.permute.xlu0 %1367
        %v1369 = vlaneseq
        %v1370 = vshrl.u32 %v1369, 7
        %v1371 = vsub.s32 %v868, %v1370
        %v1372 = vrot.slane %v1368, %v1371
        %v1373 = vsel %vm916, %v1372, 0
        %1375 = vmatprep.subr.mxu0 0.0
        %1376 = vmatpush1.msra.mxu0 0.0
        %1377 = vmatprep.subr.mxu0 0.0
        %1378 = vmatpush1.msra.mxu0 0.0
        %1379 = vmatprep.subr.mxu0 0.0
        %1380 = vmatpush1.msra.mxu0 0.0
        %1381 = vmatprep.subr.mxu0 0.0
        %1382 = vmatpush1.msra.mxu0 0.0
        %1383 = vmatprep.subr.mxu0 0.0
        %1384 = vmatpush1.msra.mxu0 0.0
        %1385 = vmatprep.subr.mxu0 0.0
        %1386 = vmatpush1.msra.mxu0 0.0
        %1387 = vmatprep.subr.mxu0 0.0
        %1388 = vmatpush1.msra.mxu0 0.0
        %1389 = vmatprep.subr.mxu0 0.0
        %1390 = vmatpush1.msra.mxu0 0.0
        %1391 = vmatprep.subr.mxu0 0.0
        %1392 = vmatpush1.msra.mxu0 0.0
        %1393 = vmatprep.subr.mxu0 0.0
        %1394 = vmatpush1.msra.mxu0 0.0
        %1395 = vmatprep.subr.mxu0 0.0
        %1396 = vmatpush1.msra.mxu0 0.0
        %1397 = vmatprep.subr.mxu0 0.0
        %1398 = vmatpush1.msra.mxu0 0.0
        %1399 = vmatprep.subr.mxu0 0.0
        %1400 = vmatpush1.msra.mxu0 0.0
        %1401 = vmatprep.subr.mxu0 0.0
        %1402 = vmatpush1.msra.mxu0 0.0
        %1403 = vmatprep.subr.mxu0 0.0
        %1404 = vmatpush1.msra.mxu0 0.0
        %1405 = vmatprep.subr.mxu0 0.0
        %1406 = vmatpush1.msra.mxu0 %v1120
        %1407 = vmatprep.subr.mxu0 0.0
        %1408 = vmatpush2.msra.mxu0 0.0
        %1409 = vmatprep.subr.mxu0 0.0
        %1410 = vmatpush2.msra.mxu0 0.0
        %1411 = vmatprep.subr.mxu0 0.0
        %1412 = vmatpush2.msra.mxu0 0.0
        %1413 = vmatprep.subr.mxu0 0.0
        %1414 = vmatpush2.msra.mxu0 0.0
        %1415 = vmatprep.subr.mxu0 0.0
        %1416 = vmatpush2.msra.mxu0 0.0
        %1417 = vmatprep.subr.mxu0 0.0
        %1418 = vmatpush2.msra.mxu0 0.0
        %1419 = vmatprep.subr.mxu0 0.0
        %1420 = vmatpush2.msra.mxu0 0.0
        %1421 = vmatprep.subr.mxu0 0.0
        %1422 = vmatpush2.msra.mxu0 0.0
        %1423 = vmatprep.subr.mxu0 0.0
        %1424 = vmatpush2.msra.mxu0 0.0
        %1425 = vmatprep.subr.mxu0 0.0
        %1426 = vmatpush2.msra.mxu0 0.0
        %1427 = vmatprep.subr.mxu0 0.0
        %1428 = vmatpush2.msra.mxu0 0.0
        %1429 = vmatprep.subr.mxu0 0.0
        %1430 = vmatpush2.msra.mxu0 0.0
        %1431 = vmatprep.subr.mxu0 0.0
        %1432 = vmatpush2.msra.mxu0 0.0
        %1433 = vmatprep.subr.mxu0 0.0
        %1434 = vmatpush2.msra.mxu0 0.0
        %1435 = vmatprep.subr.mxu0 0.0
        %1436 = vmatpush2.msra.mxu0 0.0
        %1437 = vmatprep.subr.mxu0 0.0
        %1438 = vmatpush2.msra.mxu0 0.0
        %1439 = vmatprep.mubr.f32.mxu0 0.0
        %1440 = vmatmul.mubr.f32.gmra.mxu0 %v1373
        %v1441 = vpop.f32.mrf.mxu0
        %v1442 = vadd.f32 0.0, %v1441
        %v1443 = vpop.f32.mrf.mxu0
        %1444 = vdwg.mxu0
        %1446 = vset.pattern.permute.xlu0 0
        %1447 = vperm.xlu0 %1446, %v1110
        %v1448 = vpop.permute.xlu0 %1447
        %v1449 = vlaneseq
        %v1450 = vshrl.u32 %v1449, 7
        %v1451 = vsub.s32 %v868, %v1450
        %v1452 = vrot.slane %v1448, %v1451
        %v1453 = vsel %vm916, %v1452, 0
        %1455 = vmatprep.subr.mxu0 0.0
        %1456 = vmatpush1.msra.mxu0 0.0
        %1457 = vmatprep.subr.mxu0 0.0
        %1458 = vmatpush1.msra.mxu0 0.0
        %1459 = vmatprep.subr.mxu0 0.0
        %1460 = vmatpush1.msra.mxu0 0.0
        %1461 = vmatprep.subr.mxu0 0.0
        %1462 = vmatpush1.msra.mxu0 0.0
        %1463 = vmatprep.subr.mxu0 0.0
        %1464 = vmatpush1.msra.mxu0 0.0
        %1465 = vmatprep.subr.mxu0 0.0
        %1466 = vmatpush1.msra.mxu0 0.0
        %1467 = vmatprep.subr.mxu0 0.0
        %1468 = vmatpush1.msra.mxu0 0.0
        %1469 = vmatprep.subr.mxu0 0.0
        %1470 = vmatpush1.msra.mxu0 0.0
        %1471 = vmatprep.subr.mxu0 0.0
        %1472 = vmatpush1.msra.mxu0 0.0
        %1473 = vmatprep.subr.mxu0 0.0
        %1474 = vmatpush1.msra.mxu0 0.0
        %1475 = vmatprep.subr.mxu0 0.0
        %1476 = vmatpush1.msra.mxu0 0.0
        %1477 = vmatprep.subr.mxu0 0.0
        %1478 = vmatpush1.msra.mxu0 0.0
        %1479 = vmatprep.subr.mxu0 0.0
        %1480 = vmatpush1.msra.mxu0 0.0
        %1481 = vmatprep.subr.mxu0 0.0
        %1482 = vmatpush1.msra.mxu0 0.0
        %1483 = vmatprep.subr.mxu0 0.0
        %1484 = vmatpush1.msra.mxu0 0.0
        %1485 = vmatprep.subr.mxu0 0.0
        %1486 = vmatpush1.msra.mxu0 %v1121
        %1487 = vmatprep.subr.mxu0 0.0
        %1488 = vmatpush2.msra.mxu0 0.0
        %1489 = vmatprep.subr.mxu0 0.0
        %1490 = vmatpush2.msra.mxu0 0.0
        %1491 = vmatprep.subr.mxu0 0.0
        %1492 = vmatpush2.msra.mxu0 0.0
        %1493 = vmatprep.subr.mxu0 0.0
        %1494 = vmatpush2.msra.mxu0 0.0
        %1495 = vmatprep.subr.mxu0 0.0
        %1496 = vmatpush2.msra.mxu0 0.0
        %1497 = vmatprep.subr.mxu0 0.0
        %1498 = vmatpush2.msra.mxu0 0.0
        %1499 = vmatprep.subr.mxu0 0.0
        %1500 = vmatpush2.msra.mxu0 0.0
        %1501 = vmatprep.subr.mxu0 0.0
        %1502 = vmatpush2.msra.mxu0 0.0
        %1503 = vmatprep.subr.mxu0 0.0
        %1504 = vmatpush2.msra.mxu0 0.0
        %1505 = vmatprep.subr.mxu0 0.0
        %1506 = vmatpush2.msra.mxu0 0.0
        %1507 = vmatprep.subr.mxu0 0.0
        %1508 = vmatpush2.msra.mxu0 0.0
        %1509 = vmatprep.subr.mxu0 0.0
        %1510 = vmatpush2.msra.mxu0 0.0
        %1511 = vmatprep.subr.mxu0 0.0
        %1512 = vmatpush2.msra.mxu0 0.0
        %1513 = vmatprep.subr.mxu0 0.0
        %1514 = vmatpush2.msra.mxu0 0.0
        %1515 = vmatprep.subr.mxu0 0.0
        %1516 = vmatpush2.msra.mxu0 0.0
        %1517 = vmatprep.subr.mxu0 0.0
        %1518 = vmatpush2.msra.mxu0 0.0
        %1519 = vmatprep.mubr.f32.mxu0 0.0
        %1520 = vmatmul.mubr.f32.gmra.mxu0 %v1453
        %v1521 = vpop.f32.mrf.mxu0
        %v1522 = vadd.f32 0.0, %v1521
        %v1523 = vpop.f32.mrf.mxu0
        %1524 = vdwg.mxu0
        %1526 = vset.pattern.permute.xlu0 0
        %1527 = vperm.xlu0 %1526, %v1112
        %v1528 = vpop.permute.xlu0 %1527
        %v1529 = vlaneseq
        %v1530 = vshrl.u32 %v1529, 7
        %v1531 = vsub.s32 %v868, %v1530
        %v1532 = vrot.slane %v1528, %v1531
        %v1533 = vsel %vm916, %v1532, 0
        %1535 = vmatprep.subr.mxu0 0.0
        %1536 = vmatpush1.msra.mxu0 0.0
        %1537 = vmatprep.subr.mxu0 0.0
        %1538 = vmatpush1.msra.mxu0 0.0
        %1539 = vmatprep.subr.mxu0 0.0
        %1540 = vmatpush1.msra.mxu0 0.0
        %1541 = vmatprep.subr.mxu0 0.0
        %1542 = vmatpush1.msra.mxu0 0.0
        %1543 = vmatprep.subr.mxu0 0.0
        %1544 = vmatpush1.msra.mxu0 0.0
        %1545 = vmatprep.subr.mxu0 0.0
        %1546 = vmatpush1.msra.mxu0 0.0
        %1547 = vmatprep.subr.mxu0 0.0
        %1548 = vmatpush1.msra.mxu0 0.0
        %1549 = vmatprep.subr.mxu0 0.0
        %1550 = vmatpush1.msra.mxu0 0.0
        %1551 = vmatprep.subr.mxu0 0.0
        %1552 = vmatpush1.msra.mxu0 0.0
        %1553 = vmatprep.subr.mxu0 0.0
        %1554 = vmatpush1.msra.mxu0 0.0
        %1555 = vmatprep.subr.mxu0 0.0
        %1556 = vmatpush1.msra.mxu0 0.0
        %1557 = vmatprep.subr.mxu0 0.0
        %1558 = vmatpush1.msra.mxu0 0.0
        %1559 = vmatprep.subr.mxu0 0.0
        %1560 = vmatpush1.msra.mxu0 0.0
        %1561 = vmatprep.subr.mxu0 0.0
        %1562 = vmatpush1.msra.mxu0 0.0
        %1563 = vmatprep.subr.mxu0 0.0
        %1564 = vmatpush1.msra.mxu0 0.0
        %1565 = vmatprep.subr.mxu0 0.0
        %1566 = vmatpush1.msra.mxu0 %v1122
        %1567 = vmatprep.subr.mxu0 0.0
        %1568 = vmatpush2.msra.mxu0 0.0
        %1569 = vmatprep.subr.mxu0 0.0
        %1570 = vmatpush2.msra.mxu0 0.0
        %1571 = vmatprep.subr.mxu0 0.0
        %1572 = vmatpush2.msra.mxu0 0.0
        %1573 = vmatprep.subr.mxu0 0.0
        %1574 = vmatpush2.msra.mxu0 0.0
        %1575 = vmatprep.subr.mxu0 0.0
        %1576 = vmatpush2.msra.mxu0 0.0
        %1577 = vmatprep.subr.mxu0 0.0
        %1578 = vmatpush2.msra.mxu0 0.0
        %1579 = vmatprep.subr.mxu0 0.0
        %1580 = vmatpush2.msra.mxu0 0.0
        %1581 = vmatprep.subr.mxu0 0.0
        %1582 = vmatpush2.msra.mxu0 0.0
        %1583 = vmatprep.subr.mxu0 0.0
        %1584 = vmatpush2.msra.mxu0 0.0
        %1585 = vmatprep.subr.mxu0 0.0
        %1586 = vmatpush2.msra.mxu0 0.0
        %1587 = vmatprep.subr.mxu0 0.0
        %1588 = vmatpush2.msra.mxu0 0.0
        %1589 = vmatprep.subr.mxu0 0.0
        %1590 = vmatpush2.msra.mxu0 0.0
        %1591 = vmatprep.subr.mxu0 0.0
        %1592 = vmatpush2.msra.mxu0 0.0
        %1593 = vmatprep.subr.mxu0 0.0
        %1594 = vmatpush2.msra.mxu0 0.0
        %1595 = vmatprep.subr.mxu0 0.0
        %1596 = vmatpush2.msra.mxu0 0.0
        %1597 = vmatprep.subr.mxu0 0.0
        %1598 = vmatpush2.msra.mxu0 0.0
        %1599 = vmatprep.mubr.f32.mxu0 0.0
        %1600 = vmatmul.mubr.f32.gmra.mxu0 %v1533
        %v1601 = vpop.f32.mrf.mxu0
        %v1602 = vadd.f32 0.0, %v1601
        %v1603 = vpop.f32.mrf.mxu0
        %1604 = vdwg.mxu0
        %1606 = vset.pattern.permute.xlu0 0
        %1607 = vperm.xlu0 %1606, %v1114
        %v1608 = vpop.permute.xlu0 %1607
        %v1609 = vlaneseq
        %v1610 = vshrl.u32 %v1609, 7
        %v1611 = vsub.s32 %v868, %v1610
        %v1612 = vrot.slane %v1608, %v1611
        %v1613 = vsel %vm916, %v1612, 0
        %1615 = vmatprep.subr.mxu0 0.0
        %1616 = vmatpush1.msra.mxu0 0.0
        %1617 = vmatprep.subr.mxu0 0.0
        %1618 = vmatpush1.msra.mxu0 0.0
        %1619 = vmatprep.subr.mxu0 0.0
        %1620 = vmatpush1.msra.mxu0 0.0
        %1621 = vmatprep.subr.mxu0 0.0
        %1622 = vmatpush1.msra.mxu0 0.0
        %1623 = vmatprep.subr.mxu0 0.0
        %1624 = vmatpush1.msra.mxu0 0.0
        %1625 = vmatprep.subr.mxu0 0.0
        %1626 = vmatpush1.msra.mxu0 0.0
        %1627 = vmatprep.subr.mxu0 0.0
        %1628 = vmatpush1.msra.mxu0 0.0
        %1629 = vmatprep.subr.mxu0 0.0
        %1630 = vmatpush1.msra.mxu0 0.0
        %1631 = vmatprep.subr.mxu0 0.0
        %1632 = vmatpush1.msra.mxu0 0.0
        %1633 = vmatprep.subr.mxu0 0.0
        %1634 = vmatpush1.msra.mxu0 0.0
        %1635 = vmatprep.subr.mxu0 0.0
        %1636 = vmatpush1.msra.mxu0 0.0
        %1637 = vmatprep.subr.mxu0 0.0
        %1638 = vmatpush1.msra.mxu0 0.0
        %1639 = vmatprep.subr.mxu0 0.0
        %1640 = vmatpush1.msra.mxu0 0.0
        %1641 = vmatprep.subr.mxu0 0.0
        %1642 = vmatpush1.msra.mxu0 0.0
        %1643 = vmatprep.subr.mxu0 0.0
        %1644 = vmatpush1.msra.mxu0 0.0
        %1645 = vmatprep.subr.mxu0 0.0
        %1646 = vmatpush1.msra.mxu0 %v1123
        %1647 = vmatprep.subr.mxu0 0.0
        %1648 = vmatpush2.msra.mxu0 0.0
        %1649 = vmatprep.subr.mxu0 0.0
        %1650 = vmatpush2.msra.mxu0 0.0
        %1651 = vmatprep.subr.mxu0 0.0
        %1652 = vmatpush2.msra.mxu0 0.0
        %1653 = vmatprep.subr.mxu0 0.0
        %1654 = vmatpush2.msra.mxu0 0.0
        %1655 = vmatprep.subr.mxu0 0.0
        %1656 = vmatpush2.msra.mxu0 0.0
        %1657 = vmatprep.subr.mxu0 0.0
        %1658 = vmatpush2.msra.mxu0 0.0
        %1659 = vmatprep.subr.mxu0 0.0
        %1660 = vmatpush2.msra.mxu0 0.0
        %1661 = vmatprep.subr.mxu0 0.0
        %1662 = vmatpush2.msra.mxu0 0.0
        %1663 = vmatprep.subr.mxu0 0.0
        %1664 = vmatpush2.msra.mxu0 0.0
        %1665 = vmatprep.subr.mxu0 0.0
        %1666 = vmatpush2.msra.mxu0 0.0
        %1667 = vmatprep.subr.mxu0 0.0
        %1668 = vmatpush2.msra.mxu0 0.0
        %1669 = vmatprep.subr.mxu0 0.0
        %1670 = vmatpush2.msra.mxu0 0.0
        %1671 = vmatprep.subr.mxu0 0.0
        %1672 = vmatpush2.msra.mxu0 0.0
        %1673 = vmatprep.subr.mxu0 0.0
        %1674 = vmatpush2.msra.mxu0 0.0
        %1675 = vmatprep.subr.mxu0 0.0
        %1676 = vmatpush2.msra.mxu0 0.0
        %1677 = vmatprep.subr.mxu0 0.0
        %1678 = vmatpush2.msra.mxu0 0.0
        %1679 = vmatprep.mubr.f32.mxu0 0.0
        %1680 = vmatmul.mubr.f32.gmra.mxu0 %v1613
        %v1681 = vpop.f32.mrf.mxu0
        %v1682 = vadd.f32 0.0, %v1681
        %v1683 = vpop.f32.mrf.mxu0
        %1684 = vdwg.mxu0
        %1686 = vset.pattern.permute.xlu0 0
        %1687 = vperm.xlu0 %1686, %v1116
        %v1688 = vpop.permute.xlu0 %1687
        %v1689 = vlaneseq
        %v1690 = vshrl.u32 %v1689, 7
        %v1691 = vsub.s32 %v868, %v1690
        %v1692 = vrot.slane %v1688, %v1691
        %v1693 = vsel %vm916, %v1692, 0
        %1695 = vmatprep.subr.mxu0 0.0
        %1696 = vmatpush1.msra.mxu0 0.0
        %1697 = vmatprep.subr.mxu0 0.0
        %1698 = vmatpush1.msra.mxu0 0.0
        %1699 = vmatprep.subr.mxu0 0.0
        %1700 = vmatpush1.msra.mxu0 0.0
        %1701 = vmatprep.subr.mxu0 0.0
        %1702 = vmatpush1.msra.mxu0 0.0
        %1703 = vmatprep.subr.mxu0 0.0
        %1704 = vmatpush1.msra.mxu0 0.0
        %1705 = vmatprep.subr.mxu0 0.0
        %1706 = vmatpush1.msra.mxu0 0.0
        %1707 = vmatprep.subr.mxu0 0.0
        %1708 = vmatpush1.msra.mxu0 0.0
        %1709 = vmatprep.subr.mxu0 0.0
        %1710 = vmatpush1.msra.mxu0 0.0
        %1711 = vmatprep.subr.mxu0 0.0
        %1712 = vmatpush1.msra.mxu0 0.0
        %1713 = vmatprep.subr.mxu0 0.0
        %1714 = vmatpush1.msra.mxu0 0.0
        %1715 = vmatprep.subr.mxu0 0.0
        %1716 = vmatpush1.msra.mxu0 0.0
        %1717 = vmatprep.subr.mxu0 0.0
        %1718 = vmatpush1.msra.mxu0 0.0
        %1719 = vmatprep.subr.mxu0 0.0
        %1720 = vmatpush1.msra.mxu0 0.0
        %1721 = vmatprep.subr.mxu0 0.0
        %1722 = vmatpush1.msra.mxu0 0.0
        %1723 = vmatprep.subr.mxu0 0.0
        %1724 = vmatpush1.msra.mxu0 0.0
        %1725 = vmatprep.subr.mxu0 0.0
        %1726 = vmatpush1.msra.mxu0 %v1124
        %1727 = vmatprep.subr.mxu0 0.0
        %1728 = vmatpush2.msra.mxu0 0.0
        %1729 = vmatprep.subr.mxu0 0.0
        %1730 = vmatpush2.msra.mxu0 0.0
        %1731 = vmatprep.subr.mxu0 0.0
        %1732 = vmatpush2.msra.mxu0 0.0
        %1733 = vmatprep.subr.mxu0 0.0
        %1734 = vmatpush2.msra.mxu0 0.0
        %1735 = vmatprep.subr.mxu0 0.0
        %1736 = vmatpush2.msra.mxu0 0.0
        %1737 = vmatprep.subr.mxu0 0.0
        %1738 = vmatpush2.msra.mxu0 0.0
        %1739 = vmatprep.subr.mxu0 0.0
        %1740 = vmatpush2.msra.mxu0 0.0
        %1741 = vmatprep.subr.mxu0 0.0
        %1742 = vmatpush2.msra.mxu0 0.0
        %1743 = vmatprep.subr.mxu0 0.0
        %1744 = vmatpush2.msra.mxu0 0.0
        %1745 = vmatprep.subr.mxu0 0.0
        %1746 = vmatpush2.msra.mxu0 0.0
        %1747 = vmatprep.subr.mxu0 0.0
        %1748 = vmatpush2.msra.mxu0 0.0
        %1749 = vmatprep.subr.mxu0 0.0
        %1750 = vmatpush2.msra.mxu0 0.0
        %1751 = vmatprep.subr.mxu0 0.0
        %1752 = vmatpush2.msra.mxu0 0.0
        %1753 = vmatprep.subr.mxu0 0.0
        %1754 = vmatpush2.msra.mxu0 0.0
        %1755 = vmatprep.subr.mxu0 0.0
        %1756 = vmatpush2.msra.mxu0 0.0
        %1757 = vmatprep.subr.mxu0 0.0
        %1758 = vmatpush2.msra.mxu0 0.0
        %1759 = vmatprep.mubr.f32.mxu0 0.0
        %1760 = vmatmul.mubr.f32.gmra.mxu0 %v1693
        %v1761 = vpop.f32.mrf.mxu0
        %v1762 = vadd.f32 0.0, %v1761
        %v1763 = vpop.f32.mrf.mxu0
        %1764 = vdwg.mxu0
        %v1773 = vrot.slane %v1282, 7
        %v1774 = vsel %vm901, %v1773, %v1202
        %v1775 = vrot.slane %v1362, 6
        %v1776 = vsel %vm903, %v1775, %v1774
        %v1777 = vrot.slane %v1442, 5
        %v1778 = vsel %vm905, %v1777, %v1776
        %v1779 = vrot.slane %v1522, 4
        %v1780 = vsel %vm907, %v1779, %v1778
        %v1781 = vrot.slane %v1602, 3
        %v1782 = vsel %vm909, %v1781, %v1780
        %v1783 = vrot.slane %v1682, 2
        %v1784 = vsel %vm911, %v1783, %v1782
        %v1785 = vrot.slane %v1762, 1
        %v1786 = vsel %vm913, %v1785, %v1784
        %1787 = vrot.lane.b32.xlu0 %v1786, 32
        %v1788 = vpop.permute.xlu0 %1787
        %v1790 = vsel %vm635, %v627, %v1788
        %v1791 = vld [vmem:[%s4] sm:$0xff]
        %v1792 = vld [vmem:[%s4 + $0x8] sm:$0xff]
        %v1793 = vld [vmem:[%s4 + $0x10] sm:$0xff]
        %v1794 = vld [vmem:[%s4 + $0x18] sm:$0xff]
        %v1795 = vld [vmem:[%s4 + $0x20] sm:$0xff]
        %v1796 = vld [vmem:[%s4 + $0x28] sm:$0xff]
        %v1797 = vld [vmem:[%s4 + $0x30] sm:$0xff]
        %v1798 = vld [vmem:[%s4 + $0x38] sm:$0xff]
        %v1799 = vld [vmem:[%s4 + $0x40] sm:$0xff]
        %v1800 = vld [vmem:[%s4 + $0x48] sm:$0xff]
        %v1801 = vld [vmem:[%s4 + $0x50] sm:$0xff]
        %v1802 = vld [vmem:[%s4 + $0x58] sm:$0xff]
        %v1803 = vld [vmem:[%s4 + $0xa0] sm:$0x1]
        %v1804 = vld [vmem:[%s4 + $0xa1] sm:$0x1]
        %v1805 = vld [vmem:[#allocation2] sm:$0xff]
        %v1806 = vlaneseq
        %v1807 = vshrl.u32 %v1806, 7
        %v1808 = vsub.s32 0, %v1807
        %v1809 = vrot.slane %v1803, %v1808
        %vm1810 = vcmask 523264
        %v1812 = vsel %vm1810, %v1790, 0
        %1814 = vmatprep.subr.mxu0 0.0
        %1815 = vmatpush1.msra.mxu0 0.0
        %1816 = vmatprep.subr.mxu0 0.0
        %1817 = vmatpush1.msra.mxu0 0.0
        %1818 = vmatprep.subr.mxu0 0.0
        %1819 = vmatpush1.msra.mxu0 0.0
        %1820 = vmatprep.subr.mxu0 0.0
        %1821 = vmatpush1.msra.mxu0 0.0
        %1822 = vmatprep.subr.mxu0 0.0
        %1823 = vmatpush1.msra.mxu0 0.0
        %1824 = vmatprep.subr.mxu0 0.0
        %1825 = vmatpush1.msra.mxu0 0.0
        %1826 = vmatprep.subr.mxu0 0.0
        %1827 = vmatpush1.msra.mxu0 0.0
        %1828 = vmatprep.subr.mxu0 0.0
        %1829 = vmatpush1.msra.mxu0 0.0
        %1830 = vmatprep.subr.mxu0 0.0
        %1831 = vmatpush1.msra.mxu0 %v1798
        %1832 = vmatprep.subr.mxu0 0.0
        %1833 = vmatpush1.msra.mxu0 %v1797
        %1834 = vmatprep.subr.mxu0 0.0
        %1835 = vmatpush1.msra.mxu0 %v1796
        %1836 = vmatprep.subr.mxu0 0.0
        %1837 = vmatpush1.msra.mxu0 %v1795
        %1838 = vmatprep.subr.mxu0 0.0
        %1839 = vmatpush1.msra.mxu0 %v1794
        %1840 = vmatprep.subr.mxu0 0.0
        %1841 = vmatpush1.msra.mxu0 %v1793
        %1842 = vmatprep.subr.mxu0 0.0
        %1843 = vmatpush1.msra.mxu0 %v1792
        %1844 = vmatprep.subr.mxu0 0.0
        %1845 = vmatpush1.msra.mxu0 %v1791
        %1846 = vmatprep.subr.mxu0 0.0
        %1847 = vmatpush2.msra.mxu0 0.0
        %1848 = vmatprep.subr.mxu0 0.0
        %1849 = vmatpush2.msra.mxu0 0.0
        %1850 = vmatprep.subr.mxu0 0.0
        %1851 = vmatpush2.msra.mxu0 0.0
        %1852 = vmatprep.subr.mxu0 0.0
        %1853 = vmatpush2.msra.mxu0 0.0
        %1854 = vmatprep.subr.mxu0 0.0
        %1855 = vmatpush2.msra.mxu0 0.0
        %1856 = vmatprep.subr.mxu0 0.0
        %1857 = vmatpush2.msra.mxu0 0.0
        %1858 = vmatprep.subr.mxu0 0.0
        %1859 = vmatpush2.msra.mxu0 0.0
        %1860 = vmatprep.subr.mxu0 0.0
        %1861 = vmatpush2.msra.mxu0 0.0
        %1862 = vmatprep.subr.mxu0 0.0
        %1863 = vmatpush2.msra.mxu0 0.0
        %1864 = vmatprep.subr.mxu0 0.0
        %1865 = vmatpush2.msra.mxu0 0.0
        %1866 = vmatprep.subr.mxu0 0.0
        %1867 = vmatpush2.msra.mxu0 0.0
        %1868 = vmatprep.subr.mxu0 0.0
        %1869 = vmatpush2.msra.mxu0 0.0
        %1870 = vmatprep.subr.mxu0 0.0
        %1871 = vmatpush2.msra.mxu0 0.0
        %1872 = vmatprep.subr.mxu0 0.0
        %1873 = vmatpush2.msra.mxu0 0.0
        %1874 = vmatprep.subr.mxu0 0.0
        %1875 = vmatpush2.msra.mxu0 0.0
        %1876 = vmatprep.subr.mxu0 0.0
        %1877 = vmatpush2.msra.mxu0 0.0
        %1878 = vmatprep.mubr.f32.mxu0 0.0
        %1879 = vmatmul.mubr.f32.gmra.mxu0 %v1812
        %v1880 = vpop.f32.mrf.mxu0
        %v1881 = vadd.f32 %v1809, %v1880
        %v1882 = vpop.f32.mrf.mxu0
        %1883 = vdwg.mxu0
        %v1884 = vlaneseq
        %v1885 = vshrl.u32 %v1884, 7
        %v1886 = vsub.s32 0, %v1885
        %v1887 = vrot.slane %v1804, %v1886
        %v1889 = vsel %vm635, %v1805, 0
        %1891 = vmatprep.subr.mxu0 0.0
        %1892 = vmatpush1.msra.mxu0 0.0
        %1893 = vmatprep.subr.mxu0 0.0
        %1894 = vmatpush1.msra.mxu0 0.0
        %1895 = vmatprep.subr.mxu0 0.0
        %1896 = vmatpush1.msra.mxu0 0.0
        %1897 = vmatprep.subr.mxu0 0.0
        %1898 = vmatpush1.msra.mxu0 0.0
        %1899 = vmatprep.subr.mxu0 0.0
        %1900 = vmatpush1.msra.mxu0 0.0
        %1901 = vmatprep.subr.mxu0 0.0
        %1902 = vmatpush1.msra.mxu0 0.0
        %1903 = vmatprep.subr.mxu0 0.0
        %1904 = vmatpush1.msra.mxu0 0.0
        %1905 = vmatprep.subr.mxu0 0.0
        %1906 = vmatpush1.msra.mxu0 0.0
        %1907 = vmatprep.subr.mxu0 0.0
        %1908 = vmatpush1.msra.mxu0 0.0
        %1909 = vmatprep.subr.mxu0 0.0
        %1910 = vmatpush1.msra.mxu0 0.0
        %1911 = vmatprep.subr.mxu0 0.0
        %1912 = vmatpush1.msra.mxu0 0.0
        %1913 = vmatprep.subr.mxu0 0.0
        %1914 = vmatpush1.msra.mxu0 0.0
        %1915 = vmatprep.subr.mxu0 0.0
        %1916 = vmatpush1.msra.mxu0 %v1802
        %1917 = vmatprep.subr.mxu0 0.0
        %1918 = vmatpush1.msra.mxu0 %v1801
        %1919 = vmatprep.subr.mxu0 0.0
        %1920 = vmatpush1.msra.mxu0 %v1800
        %1921 = vmatprep.subr.mxu0 0.0
        %1922 = vmatpush1.msra.mxu0 %v1799
        %1923 = vmatprep.subr.mxu0 0.0
        %1924 = vmatpush2.msra.mxu0 0.0
        %1925 = vmatprep.subr.mxu0 0.0
        %1926 = vmatpush2.msra.mxu0 0.0
        %1927 = vmatprep.subr.mxu0 0.0
        %1928 = vmatpush2.msra.mxu0 0.0
        %1929 = vmatprep.subr.mxu0 0.0
        %1930 = vmatpush2.msra.mxu0 0.0
        %1931 = vmatprep.subr.mxu0 0.0
        %1932 = vmatpush2.msra.mxu0 0.0
        %1933 = vmatprep.subr.mxu0 0.0
        %1934 = vmatpush2.msra.mxu0 0.0
        %1935 = vmatprep.subr.mxu0 0.0
        %1936 = vmatpush2.msra.mxu0 0.0
        %1937 = vmatprep.subr.mxu0 0.0
        %1938 = vmatpush2.msra.mxu0 0.0
        %1939 = vmatprep.subr.mxu0 0.0
        %1940 = vmatpush2.msra.mxu0 0.0
        %1941 = vmatprep.subr.mxu0 0.0
        %1942 = vmatpush2.msra.mxu0 0.0
        %1943 = vmatprep.subr.mxu0 0.0
        %1944 = vmatpush2.msra.mxu0 0.0
        %1945 = vmatprep.subr.mxu0 0.0
        %1946 = vmatpush2.msra.mxu0 0.0
        %1947 = vmatprep.subr.mxu0 0.0
        %1948 = vmatpush2.msra.mxu0 0.0
        %1949 = vmatprep.subr.mxu0 0.0
        %1950 = vmatpush2.msra.mxu0 0.0
        %1951 = vmatprep.subr.mxu0 0.0
        %1952 = vmatpush2.msra.mxu0 0.0
        %1953 = vmatprep.subr.mxu0 0.0
        %1954 = vmatpush2.msra.mxu0 0.0
        %1955 = vmatprep.mubr.f32.mxu0 0.0
        %1956 = vmatmul.mubr.f32.gmra.mxu0 %v1889
        %v1957 = vpop.f32.mrf.mxu0
        %v1958 = vadd.f32 %v1887, %v1957
        %v1959 = vpop.f32.mrf.mxu0
        %1960 = vdwg.mxu0
        %v1961 = vadd.f32 %v1881, %v1958
        %v1962 = vxor.u32 %v1961, 2147483648
        %v1963 = vmul.f32 %v1962, 1.442695
        %v1964 = vpow.pop %v1963
        %v1965 = vadd.f32 %v1964, 1.0
        %v1966 = vrcp.pop %v1965
        %v1967 = vmul.f32 1.0, %v1966
        %1969 = vrot.lane.b32.xlu0 %v1958, 64
        %v1970 = vpop.permute.xlu0 %1969
        %v1972 = vmul.f32 %v1967, %v1970
        %1974 = vrot.lane.b32.xlu0 %v1972, 64
        %v1975 = vpop.permute.xlu0 %1974
        %v1977 = vadd.f32 %v1881, %v1975
        %v1978 = vtanh.pop %v1977
        %v1979 = vsub.f32 1.0, %v1967
        %1981 = vrot.lane.b32.xlu0 %v1978, 96
        %v1982 = vpop.permute.xlu0 %1981
        %v1984 = vmul.f32 %v1979, %v1982
        %1985 = vrot.lane.b32.xlu0 %v1805, 32
        %v1986 = vpop.permute.xlu0 %1985
        %v1988 = vmul.f32 %v1967, %v1986
        %v1989 = vadd.f32 %v1984, %v1988
        %1991 = vrot.lane.b32.xlu0 %v1989, 96
        %v1992 = vpop.permute.xlu0 %1991
        %1994 = vst.msk [vmem:[#allocation2] sm:$0xff] %vm635, %v1992
        %v1995 = vld [vmem:[%s4 + $0x60] sm:$0xff]
        %v1996 = vld [vmem:[%s4 + $0x68] sm:$0xff]
        %v1997 = vld [vmem:[%s4 + $0x70] sm:$0xff]
        %v1998 = vld [vmem:[%s4 + $0x78] sm:$0xff]
        %v1999 = vld [vmem:[%s4 + $0x80] sm:$0xff]
        %v2000 = vld [vmem:[%s4 + $0x88] sm:$0xff]
        %v2001 = vld [vmem:[%s4 + $0x90] sm:$0xff]
        %v2002 = vld [vmem:[%s4 + $0x98] sm:$0xff]
        %v2003 = vld [vmem:[%s4 + $0xa2] sm:$0x1]
        %v2004 = vld [vmem:[%s4 + $0xa3] sm:$0x1]
        %v2005 = vld [vmem:[%s633] sm:$0xff]
        %v2006 = vlaneseq
        %v2007 = vshrl.u32 %v2006, 7
        %v2008 = vsub.s32 0, %v2007
        %v2009 = vrot.slane %v2003, %v2008
        %v2010 = vsel %vm635, %v1992, 0
        %2012 = vmatprep.subr.mxu0 0.0
        %2013 = vmatpush1.msra.mxu0 0.0
        %2014 = vmatprep.subr.mxu0 0.0
        %2015 = vmatpush1.msra.mxu0 0.0
        %2016 = vmatprep.subr.mxu0 0.0
        %2017 = vmatpush1.msra.mxu0 0.0
        %2018 = vmatprep.subr.mxu0 0.0
        %2019 = vmatpush1.msra.mxu0 0.0
        %2020 = vmatprep.subr.mxu0 0.0
        %2021 = vmatpush1.msra.mxu0 0.0
        %2022 = vmatprep.subr.mxu0 0.0
        %2023 = vmatpush1.msra.mxu0 0.0
        %2024 = vmatprep.subr.mxu0 0.0
        %2025 = vmatpush1.msra.mxu0 0.0
        %2026 = vmatprep.subr.mxu0 0.0
        %2027 = vmatpush1.msra.mxu0 0.0
        %2028 = vmatprep.subr.mxu0 0.0
        %2029 = vmatpush1.msra.mxu0 0.0
        %2030 = vmatprep.subr.mxu0 0.0
        %2031 = vmatpush1.msra.mxu0 0.0
        %2032 = vmatprep.subr.mxu0 0.0
        %2033 = vmatpush1.msra.mxu0 0.0
        %2034 = vmatprep.subr.mxu0 0.0
        %2035 = vmatpush1.msra.mxu0 0.0
        %2036 = vmatprep.subr.mxu0 0.0
        %2037 = vmatpush1.msra.mxu0 %v1998
        %2038 = vmatprep.subr.mxu0 0.0
        %2039 = vmatpush1.msra.mxu0 %v1997
        %2040 = vmatprep.subr.mxu0 0.0
        %2041 = vmatpush1.msra.mxu0 %v1996
        %2042 = vmatprep.subr.mxu0 0.0
        %2043 = vmatpush1.msra.mxu0 %v1995
        %2044 = vmatprep.subr.mxu0 0.0
        %2045 = vmatpush2.msra.mxu0 0.0
        %2046 = vmatprep.subr.mxu0 0.0
        %2047 = vmatpush2.msra.mxu0 0.0
        %2048 = vmatprep.subr.mxu0 0.0
        %2049 = vmatpush2.msra.mxu0 0.0
        %2050 = vmatprep.subr.mxu0 0.0
        %2051 = vmatpush2.msra.mxu0 0.0
        %2052 = vmatprep.subr.mxu0 0.0
        %2053 = vmatpush2.msra.mxu0 0.0
        %2054 = vmatprep.subr.mxu0 0.0
        %2055 = vmatpush2.msra.mxu0 0.0
        %2056 = vmatprep.subr.mxu0 0.0
        %2057 = vmatpush2.msra.mxu0 0.0
        %2058 = vmatprep.subr.mxu0 0.0
        %2059 = vmatpush2.msra.mxu0 0.0
        %2060 = vmatprep.subr.mxu0 0.0
        %2061 = vmatpush2.msra.mxu0 0.0
        %2062 = vmatprep.subr.mxu0 0.0
        %2063 = vmatpush2.msra.mxu0 0.0
        %2064 = vmatprep.subr.mxu0 0.0
        %2065 = vmatpush2.msra.mxu0 0.0
        %2066 = vmatprep.subr.mxu0 0.0
        %2067 = vmatpush2.msra.mxu0 0.0
        %2068 = vmatprep.subr.mxu0 0.0
        %2069 = vmatpush2.msra.mxu0 0.0
        %2070 = vmatprep.subr.mxu0 0.0
        %2071 = vmatpush2.msra.mxu0 0.0
        %2072 = vmatprep.subr.mxu0 0.0
        %2073 = vmatpush2.msra.mxu0 0.0
        %2074 = vmatprep.subr.mxu0 0.0
        %2075 = vmatpush2.msra.mxu0 0.0
        %2076 = vmatprep.mubr.f32.mxu0 0.0
        %2077 = vmatmul.mubr.f32.gmra.mxu0 %v2010
        %v2078 = vpop.f32.mrf.mxu0
        %v2079 = vadd.f32 %v2009, %v2078
        %v2080 = vpop.f32.mrf.mxu0
        %2081 = vdwg.mxu0
        %v2082 = vlaneseq
        %v2083 = vshrl.u32 %v2082, 7
        %v2084 = vsub.s32 0, %v2083
        %v2085 = vrot.slane %v2004, %v2084
        %v2087 = vsel %vm635, %v2005, 0
        %2089 = vmatprep.subr.mxu0 0.0
        %2090 = vmatpush1.msra.mxu0 0.0
        %2091 = vmatprep.subr.mxu0 0.0
        %2092 = vmatpush1.msra.mxu0 0.0
        %2093 = vmatprep.subr.mxu0 0.0
        %2094 = vmatpush1.msra.mxu0 0.0
        %2095 = vmatprep.subr.mxu0 0.0
        %2096 = vmatpush1.msra.mxu0 0.0
        %2097 = vmatprep.subr.mxu0 0.0
        %2098 = vmatpush1.msra.mxu0 0.0
        %2099 = vmatprep.subr.mxu0 0.0
        %2100 = vmatpush1.msra.mxu0 0.0
        %2101 = vmatprep.subr.mxu0 0.0
        %2102 = vmatpush1.msra.mxu0 0.0
        %2103 = vmatprep.subr.mxu0 0.0
        %2104 = vmatpush1.msra.mxu0 0.0
        %2105 = vmatprep.subr.mxu0 0.0
        %2106 = vmatpush1.msra.mxu0 0.0
        %2107 = vmatprep.subr.mxu0 0.0
        %2108 = vmatpush1.msra.mxu0 0.0
        %2109 = vmatprep.subr.mxu0 0.0
        %2110 = vmatpush1.msra.mxu0 0.0
        %2111 = vmatprep.subr.mxu0 0.0
        %2112 = vmatpush1.msra.mxu0 0.0
        %2113 = vmatprep.subr.mxu0 0.0
        %2114 = vmatpush1.msra.mxu0 %v2002
        %2115 = vmatprep.subr.mxu0 0.0
        %2116 = vmatpush1.msra.mxu0 %v2001
        %2117 = vmatprep.subr.mxu0 0.0
        %2118 = vmatpush1.msra.mxu0 %v2000
        %2119 = vmatprep.subr.mxu0 0.0
        %2120 = vmatpush1.msra.mxu0 %v1999
        %2121 = vmatprep.subr.mxu0 0.0
        %2122 = vmatpush2.msra.mxu0 0.0
        %2123 = vmatprep.subr.mxu0 0.0
        %2124 = vmatpush2.msra.mxu0 0.0
        %2125 = vmatprep.subr.mxu0 0.0
        %2126 = vmatpush2.msra.mxu0 0.0
        %2127 = vmatprep.subr.mxu0 0.0
        %2128 = vmatpush2.msra.mxu0 0.0
        %2129 = vmatprep.subr.mxu0 0.0
        %2130 = vmatpush2.msra.mxu0 0.0
        %2131 = vmatprep.subr.mxu0 0.0
        %2132 = vmatpush2.msra.mxu0 0.0
        %2133 = vmatprep.subr.mxu0 0.0
        %2134 = vmatpush2.msra.mxu0 0.0
        %2135 = vmatprep.subr.mxu0 0.0
        %2136 = vmatpush2.msra.mxu0 0.0
        %2137 = vmatprep.subr.mxu0 0.0
        %2138 = vmatpush2.msra.mxu0 0.0
        %2139 = vmatprep.subr.mxu0 0.0
        %2140 = vmatpush2.msra.mxu0 0.0
        %2141 = vmatprep.subr.mxu0 0.0
        %2142 = vmatpush2.msra.mxu0 0.0
        %2143 = vmatprep.subr.mxu0 0.0
        %2144 = vmatpush2.msra.mxu0 0.0
        %2145 = vmatprep.subr.mxu0 0.0
        %2146 = vmatpush2.msra.mxu0 0.0
        %2147 = vmatprep.subr.mxu0 0.0
        %2148 = vmatpush2.msra.mxu0 0.0
        %2149 = vmatprep.subr.mxu0 0.0
        %2150 = vmatpush2.msra.mxu0 0.0
        %2151 = vmatprep.subr.mxu0 0.0
        %2152 = vmatpush2.msra.mxu0 0.0
        %2153 = vmatprep.mubr.f32.mxu0 0.0
        %2154 = vmatmul.mubr.f32.gmra.mxu0 %v2087
        %v2155 = vpop.f32.mrf.mxu0
        %v2156 = vadd.f32 %v2085, %v2155
        %v2157 = vpop.f32.mrf.mxu0
        %2158 = vdwg.mxu0
        %v2159 = vadd.f32 %v2079, %v2156
        %v2160 = vxor.u32 %v2159, 2147483648
        %v2161 = vmul.f32 %v2160, 1.442695
        %v2162 = vpow.pop %v2161
        %v2163 = vadd.f32 %v2162, 1.0
        %v2164 = vrcp.pop %v2163
        %v2165 = vmul.f32 1.0, %v2164
        %2167 = vrot.lane.b32.xlu0 %v2156, 64
        %v2168 = vpop.permute.xlu0 %2167
        %v2170 = vmul.f32 %v2165, %v2168
        %2172 = vrot.lane.b32.xlu0 %v2170, 64
        %v2173 = vpop.permute.xlu0 %2172
        %v2175 = vadd.f32 %v2079, %v2173
        %v2176 = vtanh.pop %v2175
        %v2177 = vsub.f32 1.0, %v2165
        %2179 = vrot.lane.b32.xlu0 %v2176, 96
        %v2180 = vpop.permute.xlu0 %2179
        %v2182 = vmul.f32 %v2177, %v2180
        %2183 = vrot.lane.b32.xlu0 %v2005, 32
        %v2184 = vpop.permute.xlu0 %2183
        %v2186 = vmul.f32 %v2165, %v2184
        %v2187 = vadd.f32 %v2182, %v2186
        %2189 = vrot.lane.b32.xlu0 %v2187, 96
        %v2190 = vpop.permute.xlu0 %2189
        %2192 = vst.msk [vmem:[%s633] sm:$0xff] %vm635, %v2190
        %v2193 = vld [vmem:[#allocation2] sm:$0xff]
        %v2194 = vld [vmem:[#allocation2 + $0x8] sm:$0xff]
        %2195 = vst.msk [vmem:[#allocation13] sm:$0xff] %vm635, %v2193
        %2196 = vst.msk [vmem:[#allocation13 + $0x8] sm:$0xff] %vm635, %v2194
        %v2197 = vld [vmem:[#allocation11] sm:$0xff]
        %v2198 = vld [vmem:[#allocation11 + $0x8] sm:$0xff]
        %v2199 = vld [vmem:[#allocation11 + $0x10] sm:$0xff]
        %v2200 = vld [vmem:[#allocation11 + $0x18] sm:$0xff]
        %v2201 = vld [vmem:[#allocation11 + $0x20] sm:$0x1]
        %v2202 = vlaneseq
        %v2203 = vshrl.u32 %v2202, 7
        %v2204 = vsub.s32 0, %v2203
        %v2205 = vrot.slane %v2201, %v2204
        %v2206 = vsel %vm635, %v2190, 0
        %2208 = vmatprep.subr.mxu0 0.0
        %2209 = vmatpush1.msra.mxu0 0.0
        %2210 = vmatprep.subr.mxu0 0.0
        %2211 = vmatpush1.msra.mxu0 0.0
        %2212 = vmatprep.subr.mxu0 0.0
        %2213 = vmatpush1.msra.mxu0 0.0
        %2214 = vmatprep.subr.mxu0 0.0
        %2215 = vmatpush1.msra.mxu0 0.0
        %2216 = vmatprep.subr.mxu0 0.0
        %2217 = vmatpush1.msra.mxu0 0.0
        %2218 = vmatprep.subr.mxu0 0.0
        %2219 = vmatpush1.msra.mxu0 0.0
        %2220 = vmatprep.subr.mxu0 0.0
        %2221 = vmatpush1.msra.mxu0 0.0
        %2222 = vmatprep.subr.mxu0 0.0
        %2223 = vmatpush1.msra.mxu0 0.0
        %2224 = vmatprep.subr.mxu0 0.0
        %2225 = vmatpush1.msra.mxu0 0.0
        %2226 = vmatprep.subr.mxu0 0.0
        %2227 = vmatpush1.msra.mxu0 0.0
        %2228 = vmatprep.subr.mxu0 0.0
        %2229 = vmatpush1.msra.mxu0 0.0
        %2230 = vmatprep.subr.mxu0 0.0
        %2231 = vmatpush1.msra.mxu0 0.0
        %2232 = vmatprep.subr.mxu0 0.0
        %2233 = vmatpush1.msra.mxu0 %v2200
        %2234 = vmatprep.subr.mxu0 0.0
        %2235 = vmatpush1.msra.mxu0 %v2199
        %2236 = vmatprep.subr.mxu0 0.0
        %2237 = vmatpush1.msra.mxu0 %v2198
        %2238 = vmatprep.subr.mxu0 0.0
        %2239 = vmatpush1.msra.mxu0 %v2197
        %2240 = vmatprep.subr.mxu0 0.0
        %2241 = vmatpush2.msra.mxu0 0.0
        %2242 = vmatprep.subr.mxu0 0.0
        %2243 = vmatpush2.msra.mxu0 0.0
        %2244 = vmatprep.subr.mxu0 0.0
        %2245 = vmatpush2.msra.mxu0 0.0
        %2246 = vmatprep.subr.mxu0 0.0
        %2247 = vmatpush2.msra.mxu0 0.0
        %2248 = vmatprep.subr.mxu0 0.0
        %2249 = vmatpush2.msra.mxu0 0.0
        %2250 = vmatprep.subr.mxu0 0.0
        %2251 = vmatpush2.msra.mxu0 0.0
        %2252 = vmatprep.subr.mxu0 0.0
        %2253 = vmatpush2.msra.mxu0 0.0
        %2254 = vmatprep.subr.mxu0 0.0
        %2255 = vmatpush2.msra.mxu0 0.0
        %2256 = vmatprep.subr.mxu0 0.0
        %2257 = vmatpush2.msra.mxu0 0.0
        %2258 = vmatprep.subr.mxu0 0.0
        %2259 = vmatpush2.msra.mxu0 0.0
        %2260 = vmatprep.subr.mxu0 0.0
        %2261 = vmatpush2.msra.mxu0 0.0
        %2262 = vmatprep.subr.mxu0 0.0
        %2263 = vmatpush2.msra.mxu0 0.0
        %2264 = vmatprep.subr.mxu0 0.0
        %2265 = vmatpush2.msra.mxu0 0.0
        %2266 = vmatprep.subr.mxu0 0.0
        %2267 = vmatpush2.msra.mxu0 0.0
        %2268 = vmatprep.subr.mxu0 0.0
        %2269 = vmatpush2.msra.mxu0 0.0
        %2270 = vmatprep.subr.mxu0 0.0
        %2271 = vmatpush2.msra.mxu0 0.0
        %2272 = vmatprep.mubr.f32.mxu0 0.0
        %2273 = vmatmul.mubr.f32.gmra.mxu0 %v2206
        %v2274 = vpop.f32.mrf.mxu0
        %v2275 = vadd.f32 %v2205, %v2274
        %v2276 = vpop.f32.mrf.mxu0
        %2277 = vdwg.mxu0
        %2278 = vmax.xlane.f32.xlu0 %v2275
        %v2279 = vpop.xlane.xlu0 %2278
        %v2280 = vsub.f32 %v2275, %v2279
        %v2281 = vmul.f32 %v2280, 1.442695
        %v2282 = vpow.pop %v2281
        %2283 = vadd.xlane.f32.xlu0 %v2282
        %v2284 = vpop.xlane.xlu0 %2283
        %v2285 = vlog2.pop %v2284
        %v2286 = vmul.f32 %v2285, 0.6931472
        %v2287 = vsub.f32 %v2280, %v2286
        %2288 = vst [vmem:[%s338] sm:$0xff] %v2287
        %s2289 = sand.u32 %s190, 1
        %s2290 = scalar_lea.sflag [#allocation8], %s2289
        %s2291 = sand.u32 %s190, 1
        %s2292 = smul.addr %s2291, 8
        %s2293 = scalar_lea.vmem [#allocation12], %s2292
        // Predicated region
        $region61: #{tpu_custom_call.1} parent=43 // pred_check
          %p2294 = pneg %p200
        $region62: #{tpu_custom_call.1} parent=43 // pred_check_branch
          %2296 = sbr.rel (%p2294) target = $region64
        $region63: #{tpu_custom_call.1} parent=43 // pred_region
          %s2298 = ssub.s32 128, 128
          %2299 = vsyncadd %s2290, %s2298
          %s2300 = sadd.s32 %s36, %s37
          %s2301 = smul.addr %s2300, 128
          %s2302 = scalar_lea.hbm %s7, %s2301
          %s2304 = sshll.u32 %s2293, 4
          %s2305 = int_to_ptr.vmem [resolvable:$true] %s2304
          %2307 = dma.vmem_to_hbm [thread:$0]  %s2305, 128, %s2302, %s2290
        $region64: #{tpu_custom_call.1} parent=43 // pred_fallthru
          _
        // Predicated region
        $region65: #{tpu_custom_call.1} parent=43 // pred_check
          %p2308 = pneg %p226
        $region66: #{tpu_custom_call.1} parent=43 // pred_check_branch
          %2310 = sbr.rel (%p2308) target = $region68
        $region67: #{tpu_custom_call.1} parent=43 // pred_region
          %s2312 = ssub.s32 256, 256
          %2313 = vsyncadd [#allocation14], %s2312
          %s2314 = smul.addr %s36, 128
          %s2315 = scalar_lea.hbm %s8, %s2314
          %s2316 = sshll.u32 [#allocation13], 4
          %s2317 = int_to_ptr.vmem [resolvable:$true] %s2316
          %2322 = dma.vmem_to_hbm [thread:$0]  %s2317, 256, %s2315, [#allocation14], 128, 128, 8
        $region68: #{tpu_custom_call.1} parent=43 // pred_fallthru
          _
        // Predicated region
        $region69: #{tpu_custom_call.1} parent=43 // pred_check
          %p2323 = pneg %p226
        $region70: #{tpu_custom_call.1} parent=43 // pred_check_branch
          %2325 = sbr.rel (%p2323) target = $region72
        $region71: #{tpu_custom_call.1} parent=43 // pred_region
          %2326 = dma.done [#allocation14], 256
        $region72: #{tpu_custom_call.1} parent=43 // pred_fallthru
          _
      $region44: #{tpu_custom_call.1} parent=5 // pred_fallthru
        _
      %p2327 = scmp.le.s32.totalorder 2, %s27
      // Predicated region
      $region73: #{tpu_custom_call.1} parent=5 // pred_check
        %p2328 = pneg %p2327
      $region74: #{tpu_custom_call.1} parent=5 // pred_check_branch
        %2330 = sbr.rel (%p2328) target = $region76
      $region75: #{tpu_custom_call.1} parent=5 // pred_region
        %s2331 = ssub.s32 %s27, 2
        // Predicated region
        $region77: #{tpu_custom_call.1} parent=75 // pred_check
          %p2332 = pneg %p206
        $region78: #{tpu_custom_call.1} parent=75 // pred_check_branch
          %2334 = sbr.rel (%p2332) target = $region80
        $region79: #{tpu_custom_call.1} parent=75 // pred_region
          %s2335 = sand.u32 %s191, 1
          %s2336 = scalar_lea.sflag [#allocation8], %s2335
          %s2337 = sand.u32 %s191, 1
          %s2338 = smul.addr %s2337, 8
          %s2339 = scalar_lea.vmem [#allocation12], %s2338
          %2340 = dma.done %s2336, 128
        $region80: #{tpu_custom_call.1} parent=75 // pred_fallthru
          _
      $region76: #{tpu_custom_call.1} parent=5 // pred_fallthru
        _
    $region6: #{tpu_custom_call.1} parent=1 // loop_footer
      %s31 = sadd.s32 1, %s27
    $region7: #{tpu_custom_call.1} parent=1 // loop_footer_branch
      %26 = sbr.rel target = $region3
    $region8: #{tpu_custom_call.1} parent=1 // loop_exit
      _
    %2341 = vsyncpa [#allocation7], 1
    %s2342 = scalar_lea.sflag [#allocation7], 1
    %2343 = vsyncpa %s2342, 1
    %2344 = vsyncpa [#allocation10], 1
    %2345 = vsyncpa [#allocation8], 1
    %s2346 = scalar_lea.sflag [#allocation8], 1
    %2347 = vsyncpa %s2346, 1
    %2348 = vsyncpa [#allocation14], 1

</llo_original>
